<compile_context>
chip_gen: v6e
topology: v6e:2x2x1
jax: 0.10.0
libtpu: 0.0.40
codegen_flags: <defaults>
</compile_context>

<pallas_src>
import jax
import jax.numpy as jnp
from jax.experimental import pallas as pl
from jax.experimental.pallas import tpu as pltpu

_LANE = 128
_SUBLANE_F32 = 8
_SUBLANE_BF16 = 16


def _round_up(x, m):
    return ((x + m - 1) // m) * m


def _cdiv(a, b):
    return -(-a // b)


# ----------------------------------------------------------------------------
# Pallas kernel: fused (1x1 conv + folded BN + ReLU) MLP stack + max over K
# ----------------------------------------------------------------------------
def _make_mlp_max_kernel(num_layers, K):
    def kernel(*refs):
        x_ref = refs[0]                               # [bs_tile, K, C_in] bf16
        out_ref = refs[-1]                            # [bs_tile, C_out_pad] f32
        bs_tile = x_ref.shape[0]
        c_in = x_ref.shape[2]
        # Merge (point, neighbor) into the row dim. Layout-preserving because K is a
        # multiple of the bf16 sublane pack (16) -> no in-VMEM relayout.
        h = x_ref[...].reshape(bs_tile * K, c_in)
        z = None
        for l in range(num_layers):                   # unrolled Python loop (LLO visibility)
            w = refs[1 + 2 * l][...]                  # bf16 [C_in_l, C_out_l_pad]
            z = jnp.dot(h, w, preferred_element_type=jnp.float32)
            if l < num_layers - 1:
                b = refs[2 + 2 * l][...]              # f32  [1, C_out_l_pad]
                h = jnp.maximum(z + b, 0.0).astype(jnp.bfloat16)
        c_out = z.shape[-1]
        # K-max on the raw final matmul output; shared bias + monotone ReLU are
        # hoisted past the max and applied once per point (saves (K-1)/K VPU work).
        zmax = jnp.max(z.reshape(bs_tile, K, c_out), axis=1)
        b_last = refs[2 * num_layers][...]            # f32 [1, C_out_pad]
        out_ref[...] = jnp.maximum(zmax + b_last, 0.0)
    return kernel


def _vmem_limit_bytes():
    try:
        cap = int(pltpu.get_tpu_info().vmem_capacity_bytes)
    except Exception:
        cap = 64 * 1024 * 1024        # conservative default (v7x per-TC physical VMEM)
    # ~80% of physical, capped at 112 MiB (v5e/v6e have 128 MiB physical).
    return max(32 * 1024 * 1024, min(cap * 4 // 5, 112 * 1024 * 1024))


def mlp_max_pallas(grouped, weights, biases):
    """grouped: [B, S, K, C_in] bf16 (K a multiple of 16; C_in real width, may include
    zero-padded channels hitting zero weight rows).  weights[l]: [C_in_l, C_out_l],
    biases[l]: [C_out_l].  Returns [B, S, C_out_last] f32."""
    B, S, K, C_in = grouped.shape
    num_layers = len(weights)
    C_out = weights[-1].shape[1]
    assert weights[0].shape[0] <= C_in

    # 128-padding only on the tiny VMEM-resident weights/bias; the activation keeps
    # its real channel width in HBM (dominant DMA stream).
    co_pads = [_round_up(w.shape[1], _LANE) for w in weights]
    ci_pads = [C_in] + co_pads[:-1]
    c_out_pad = co_pads[-1]
    max_co_pad = max(co_pads)

    rows = B * S
    x = grouped.reshape(rows, K, C_in)                # contiguous reshape, no extra HBM pass

    # --- row tile from VMEM budget; >= 2 (even) grid steps so "parallel" can shard
    #     across v7x's two TensorCores; larger tiles on v5e/v6e's 128 MiB VMEM.
    vmem_limit = _vmem_limit_bytes()
    w_bytes = sum(ci * co * 2 * 2 + co * 4 * 2 for ci, co in zip(ci_pads, co_pads))
    per_point = K * (2 * C_in * 2 + 6 * max_co_pad) + 2 * 4 * c_out_pad
    budget = max(vmem_limit // 2 - w_bytes, 1 << 20)
    bs_cap = max(_SUBLANE_F32,
                 min(4096, (budget // per_point) // _SUBLANE_F32 * _SUBLANE_F32))
    n_steps = _cdiv(rows, bs_cap)
    if rows > _SUBLANE_F32:
        n_steps = max(n_steps, 2)
    if n_steps > 1 and n_steps % 2 == 1:
        n_steps += 1                                   # balanced 2-TC split on v7x
    bs_tile = _round_up(max(_cdiv(rows, n_steps), _SUBLANE_F32), _SUBLANE_F32)
    rows_pad = bs_tile * n_steps
    if rows_pad != rows:
        x = jnp.pad(x, ((0, rows_pad - rows), (0, 0), (0, 0)))

    # Padded weights / biases (bf16 weights for the MXU, f32 bias for the epilogue).
    args = [x]
    for l, (w, b) in enumerate(zip(weights, biases)):
        ci_r, co_r = w.shape
        w_p = jnp.zeros((ci_pads[l], co_pads[l]), jnp.bfloat16).at[:ci_r, :co_r].set(
            w.astype(jnp.bfloat16))
        b_p = jnp.zeros((1, co_pads[l]), jnp.float32).at[0, :co_r].set(
            b.astype(jnp.float32))
        args.extend([w_p, b_p])

    kernel = _make_mlp_max_kernel(num_layers, K)
    n_grid = rows_pad // bs_tile

    def run(buffer_weights):
        in_specs = [pl.BlockSpec((bs_tile, K, C_in), lambda i: (i, 0, 0))]
        for l in range(num_layers):
            kw = {"pipeline_mode": pl.Buffered(1)} if buffer_weights else {}
            in_specs.append(pl.BlockSpec((ci_pads[l], co_pads[l]), lambda i: (0, 0), **kw))
            in_specs.append(pl.BlockSpec((1, co_pads[l]), lambda i: (0, 0), **kw))
        return pl.pallas_call(
            kernel,
            out_shape=jax.ShapeDtypeStruct((rows_pad, c_out_pad), jnp.float32),
            grid_spec=pltpu.PrefetchScalarGridSpec(
                num_scalar_prefetch=0,
                grid=(n_grid,),
                in_specs=in_specs,
                out_specs=pl.BlockSpec((bs_tile, c_out_pad), lambda i: (i, 0)),
            ),
            compiler_params=pltpu.CompilerParams(
                dimension_semantics=("parallel",),
                vmem_limit_bytes=vmem_limit,
            ),
        )(*args)

    try:
        out = run(True)        # single-buffer the grid-invariant weight/bias blocks
    except Exception:
        out = run(False)       # fallback if pipeline_mode=pl.Buffered(1) is unsupported
    # Padded rows / channels hold relu(bias) garbage -> must be sliced off here.
    return out[:rows, :C_out].reshape(B, S, C_out)


# ----------------------------------------------------------------------------
# Plain-JAX glue: FPS sampling, ball query, gathers
# ----------------------------------------------------------------------------
def farthest_point_sample(xyz_t, S):
    """xyz_t: [B, N, 3] -> indices [B, S] (int32). Deterministic start at index 0.
    TODO(synk): sequential FPS loop dominates wall time for large N/S and deserves
    its own kernel."""
    B, N, _ = xyz_t.shape

    def body(i, state):
        dists, farthest, idxs = state
        idxs = idxs.at[:, i].set(farthest)
        centroid = jnp.take_along_axis(xyz_t, farthest[:, None, None], axis=1)  # [B,1,3]
        d = jnp.sum((xyz_t - centroid) ** 2, axis=-1)                           # [B,N]
        dists = jnp.minimum(dists, d)
        farthest = jnp.argmax(dists, axis=-1).astype(jnp.int32)
        return dists, farthest, idxs

    state = (jnp.full((B, N), 1e10, jnp.float32),
             jnp.zeros((B,), jnp.int32),
             jnp.zeros((B, S), jnp.int32))
    _, _, idxs = jax.lax.fori_loop(0, S, body, state)
    return idxs


def query_ball_point(radius, nsample, xyz_t, new_xyz_t):
    """xyz_t: [B,N,3], new_xyz_t: [B,S,3] -> group_idx [B,S,nsample] (int32).
    First `nsample` points (by index order) within `radius`; slots beyond the valid
    count are filled with the first valid index.  Empty balls fall back to index N-1
    (matching PyTorch's -1 wraparound)."""
    B, N, _ = xyz_t.shape
    d2 = jnp.sum((new_xyz_t[:, :, None, :] - xyz_t[:, None, :, :]) ** 2, axis=-1)  # [B,S,N]
    mask = d2 <= radius * radius
    ar = jnp.arange(N, dtype=jnp.int32)
    key = jnp.where(mask, N - ar, 0)                        # in-ball -> N-idx in [1..N]
    topv = jax.lax.top_k(key, nsample)[0]                   # descending keys == ascending idx
    idx = (N - topv).astype(jnp.int32)                      # invalid slots -> N
    cnt = jnp.sum(mask, axis=-1, keepdims=True).astype(jnp.int32)
    first = jnp.minimum(idx[..., 0:1], N - 1)
    valid = jnp.arange(nsample, dtype=jnp.int32)[None, None, :] < cnt
    return jnp.where(valid, idx, first)


def index_points(points_t, idx):
    """points_t: [B, N, C], idx: [B, S, ...] -> [B, S, ..., C]."""
    B = points_t.shape[0]
    bidx = jnp.arange(B).reshape((B,) + (1,) * (idx.ndim - 1))
    return points_t[bidx, idx]


# ----------------------------------------------------------------------------
# Module wrapper with deterministic parameter init (conv + eval-mode BN folded)
# ----------------------------------------------------------------------------
class PointNetSAModulePallas:
    def __init__(self, npoint, nsample, radius, in_channel, mlp,
                 if_bn=True, group_all=False, use_xyz=True, key=None):
        self.npoint = npoint
        self.nsample = nsample
        self.radius = radius
        self.use_xyz = use_xyz
        if use_xyz:
            in_channel += 3
        if key is None:
            key = jax.random.PRNGKey(42)

        eps = 1e-5
        last_c = in_channel
        self.w_eff, self.b_eff = [], []
        for out_c in mlp:
            key, kw, kb, kg, kbeta, km, kv = jax.random.split(key, 7)
            W = 0.1 * jax.random.normal(kw, (last_c, out_c), jnp.float32)        # conv weight^T
            bias = 0.05 * jax.random.normal(kb, (out_c,), jnp.float32)           # conv bias
            if if_bn:
                gamma = 1.0 + 0.1 * jax.random.normal(kg, (out_c,), jnp.float32)
                beta = 0.1 * jax.random.normal(kbeta, (out_c,), jnp.float32)
                mean = 0.05 * jax.random.normal(km, (out_c,), jnp.float32)
                var = 0.5 + 0.5 * jax.random.uniform(kv, (out_c,), jnp.float32)
                g = gamma / jnp.sqrt(var + eps)
                W_eff = W * g[None, :]
                b_eff = (bias - mean) * g + beta
            else:
                W_eff, b_eff = W, bias
            self.w_eff.append(W_eff)
            self.b_eff.append(b_eff)
            last_c = out_c

    def __call__(self, xyz, points=None):
        """xyz: [B, 3, N], points: [B, D, N] -> (new_xyz [B,3,S], new_points [B,C_out,S])."""
        B, _, N = xyz.shape
        S = self.npoint
        xyz_t = jnp.swapaxes(xyz, 1, 2)                                  # [B, N, 3]

        # --- sample ---
        if N == S:
            new_xyz_t = xyz_t
        else:
            fps_idx = farthest_point_sample(xyz_t, S)
            new_xyz_t = index_points(xyz_t, fps_idx)                     # [B, S, 3]
        new_xyz = jnp.swapaxes(new_xyz_t, 1, 2)                          # [B, 3, S]

        # --- group (bf16, K padded to a multiple of 16 by duplicating neighbor 0;
        #     duplicates are max-invariant and keep the kernel's reshape layout-free) ---
        group_idx = query_ball_point(self.radius, self.nsample, xyz_t, new_xyz_t)
        K_pad = _round_up(self.nsample, _SUBLANE_BF16)
        if K_pad != self.nsample:
            fill = jnp.broadcast_to(group_idx[..., :1], (B, S, K_pad - self.nsample))
            group_idx = jnp.concatenate([group_idx, fill], axis=-1)

        grouped_xyz = index_points(xyz_t, group_idx)                     # [B, S, Kp, 3] f32
        grouped_xyz = ((grouped_xyz - new_xyz_t[:, :, None, :]) *
                       (1.0 / self.radius)).astype(jnp.bfloat16)
        parts = []
        if points is not None:
            points_t = jnp.swapaxes(points, 1, 2).astype(jnp.bfloat16)   # [B, N, D] bf16
            parts.append(index_points(points_t, group_idx))              # [B, S, Kp, D]
        parts.append(grouped_xyz)
        c_real = sum(p.shape[-1] for p in parts)
        c_in_k = _round_up(c_real, 8)                                    # tiny even-out pad
        if c_in_k != c_real:
            parts.append(jnp.zeros((B, S, K_pad, c_in_k - c_real), jnp.bfloat16))
        grouped = jnp.concatenate(parts, axis=-1)                        # [B, S, Kp, c_in_k] bf16

        # --- fused MLP + max over K (Pallas kernel) ---
        new_points = mlp_max_pallas(grouped, self.w_eff, self.b_eff)     # [B, S, C_out] f32
        new_points = jnp.swapaxes(new_points, 1, 2)                      # [B, C_out, S]
        return new_xyz, new_points


def _ref_mlp_max_f32(grouped, weights, biases):
    """Pure-f32 JAX reference of the fused kernel (per-layer conv+bias+ReLU, max over K)."""
    h = grouped.astype(jnp.float32)
    for w, b in zip(weights, biases):
        h = jnp.einsum('bskc,cd->bskd', h, w.astype(jnp.float32))
        h = jnp.maximum(h + b[None, None, None, :].astype(jnp.float32), 0.0)
    return jnp.max(h, axis=2)


if __name__ == "__main__":
    key = jax.random.PRNGKey(0)
    B, N, D = 2, 64, 4          # batch, points, feature channels
    npoint, nsample, radius = 16, 8, 0.4
    mlp = [16, 32]

    k_xyz, k_pts = jax.random.split(key)
    xyz = jax.random.uniform(k_xyz, (B, 3, N), jnp.float32, minval=-1.0, maxval=1.0)
    points = jax.random.normal(k_pts, (B, D, N), jnp.float32)

    module = PointNetSAModulePallas(npoint, nsample, radius, in_channel=D, mlp=mlp,
                                    if_bn=True, use_xyz=True,
                                    key=jax.random.PRNGKey(1))

    new_xyz, new_points = module(xyz, points)
    new_xyz = jax.block_until_ready(new_xyz)
    new_points = jax.block_until_ready(new_points)

    assert new_xyz.shape == (B, 3, npoint)
    assert new_points.shape == (B, mlp[-1], npoint)

    # Validate the Pallas hot path against a true f32 JAX reference using the same
    # (deterministic) sampling / grouping glue.
    xyz_t = jnp.swapaxes(xyz, 1, 2)
    fps_idx = farthest_point_sample(xyz_t, npoint)
    new_xyz_t = index_points(xyz_t, fps_idx)
    gidx = query_ball_point(radius, nsample, xyz_t, new_xyz_t)
    gxyz = (index_points(xyz_t, gidx) - new_xyz_t[:, :, None, :]) / radius
    gfeat = index_points(jnp.swapaxes(points, 1, 2), gidx)
    grouped = jnp.concatenate([gfeat, gxyz], axis=-1).astype(jnp.float32)
    ref = jnp.swapaxes(_ref_mlp_max_f32(grouped, module.w_eff, module.b_eff), 1, 2)
    if not jnp.allclose(new_points, ref, atol=3e-2, rtol=3e-2):
        raise AssertionError("Pallas kernel output mismatch vs f32 JAX reference")

    print("KERNEL_OK")
</pallas_src>

<mosaic_0001>
module attributes {stable_mosaic.version = 11 : i64} {
  func.func @kernel(%arg0: i32, %arg1: memref<16x16x8xbf16, #tpu.memory_space<vmem>>, %arg2: memref<8x128xbf16, #tpu.memory_space<vmem>>, %arg3: memref<1x128xf32, #tpu.memory_space<vmem>>, %arg4: memref<128x128xbf16, #tpu.memory_space<vmem>>, %arg5: memref<1x128xf32, #tpu.memory_space<vmem>>, %arg6: memref<16x128xf32, #tpu.memory_space<vmem>>) attributes {dimension_semantics = [#tpu.dimension_semantics<parallel>], iteration_bounds = array<i64: 2>, scalar_prefetch = 0 : i64, scratch_operands = 0 : i64, tpu.core_type = #tpu.core_type<tc>, window_params = [{transform_indices = @transform_0, window_bounds = array<i64: 16, 16, 8>}, {pipeline_mode = #tpu.pipeline_mode<synchronous>, transform_indices = @transform_1, window_bounds = array<i64: 8, 128>}, {pipeline_mode = #tpu.pipeline_mode<synchronous>, transform_indices = @transform_2, window_bounds = array<i64: 1, 128>}, {pipeline_mode = #tpu.pipeline_mode<synchronous>, transform_indices = @transform_3, window_bounds = array<i64: 128, 128>}, {pipeline_mode = #tpu.pipeline_mode<synchronous>, transform_indices = @transform_4, window_bounds = array<i64: 1, 128>}, {transform_indices = @transform_5, window_bounds = array<i64: 16, 128>}]} {
    %c0 = arith.constant 0 : index
    %c0_0 = arith.constant 0 : index
    %c0_1 = arith.constant 0 : index
    %0 = vector.load %arg1[%c0, %c0_0, %c0_1] : memref<16x16x8xbf16, #tpu.memory_space<vmem>>, vector<16x16x8xbf16>
    %1 = vector.shape_cast %0 : vector<16x16x8xbf16> to vector<256x8xbf16>
    %c0_2 = arith.constant 0 : index
    %c0_3 = arith.constant 0 : index
    %2 = vector.load %arg2[%c0_2, %c0_3] : memref<8x128xbf16, #tpu.memory_space<vmem>>, vector<8x128xbf16>
    %cst = arith.constant dense<0.000000e+00> : vector<256x128xf32>
    %3 = tpu.matmul %1, %2, %cst {dimension_numbers = #tpu.dot_dimension_numbers<[1], [0], [0], [1], [0, 0, 1, 1], [], []>} : vector<256x8xbf16>, vector<8x128xbf16>, vector<256x128xf32> -> vector<256x128xf32>
    %c0_4 = arith.constant 0 : index
    %c0_5 = arith.constant 0 : index
    %4 = vector.load %arg3[%c0_4, %c0_5] : memref<1x128xf32, #tpu.memory_space<vmem>>, vector<1x128xf32>
    %5 = vector.broadcast %4 : vector<1x128xf32> to vector<256x128xf32>
    %6 = arith.addf %3, %5 : vector<256x128xf32>
    %cst_6 = arith.constant 0.000000e+00 : f32
    %7 = vector.broadcast %cst_6 : f32 to vector<256x128xf32>
    %8 = arith.maximumf %6, %7 : vector<256x128xf32>
    %9 = arith.truncf %8 : vector<256x128xf32> to vector<256x128xbf16>
    %c0_7 = arith.constant 0 : index
    %c0_8 = arith.constant 0 : index
    %10 = vector.load %arg4[%c0_7, %c0_8] : memref<128x128xbf16, #tpu.memory_space<vmem>>, vector<128x128xbf16>
    %cst_9 = arith.constant dense<0.000000e+00> : vector<256x128xf32>
    %11 = tpu.matmul %9, %10, %cst_9 {dimension_numbers = #tpu.dot_dimension_numbers<[1], [0], [0], [1], [0, 0, 1, 1], [], []>} : vector<256x128xbf16>, vector<128x128xbf16>, vector<256x128xf32> -> vector<256x128xf32>
    %12 = vector.shape_cast %11 : vector<256x128xf32> to vector<16x16x128xf32>
    %cst_10 = arith.constant dense<0xFF800000> : vector<16x128xf32>
    %13 = vector.multi_reduction <maximumf>, %12, %cst_10 [1] : vector<16x16x128xf32> to vector<16x128xf32>
    %c0_11 = arith.constant 0 : index
    %c0_12 = arith.constant 0 : index
    %14 = vector.load %arg5[%c0_11, %c0_12] : memref<1x128xf32, #tpu.memory_space<vmem>>, vector<1x128xf32>
    %15 = vector.broadcast %14 : vector<1x128xf32> to vector<16x128xf32>
    %16 = arith.addf %13, %15 : vector<16x128xf32>
    %cst_13 = arith.constant 0.000000e+00 : f32
    %17 = vector.broadcast %cst_13 : f32 to vector<16x128xf32>
    %18 = arith.maximumf %16, %17 : vector<16x128xf32>
    %c0_14 = arith.constant 0 : index
    %c0_15 = arith.constant 0 : index
    %19 = vector.load %arg6[%c0_14, %c0_15] : memref<16x128xf32, #tpu.memory_space<vmem>>, vector<16x128xf32>
    tpu.vector_store %arg6[%c0_14, %c0_15], %18 {strides = array<i32>} : memref<16x128xf32, #tpu.memory_space<vmem>>, vector<16x128xf32>,
    return
  }
  func.func @transform_0(%arg0: i32) -> (i32, i32, i32) {
    %c0_i32 = arith.constant 0 : i32
    %c0_i32_0 = arith.constant 0 : i32
    %c0_i32_1 = arith.constant 0 : i32
    return %arg0, %c0_i32, %c0_i32_0 : i32, i32, i32
  }
  func.func @transform_1(%arg0: i32) -> (i32, i32) {
    %c0_i32 = arith.constant 0 : i32
    %c0_i32_0 = arith.constant 0 : i32
    %c0_i32_1 = arith.constant 0 : i32
    return %c0_i32, %c0_i32_0 : i32, i32
  }
  func.func @transform_2(%arg0: i32) -> (i32, i32) {
    %c0_i32 = arith.constant 0 : i32
    %c0_i32_0 = arith.constant 0 : i32
    %c0_i32_1 = arith.constant 0 : i32
    return %c0_i32, %c0_i32_0 : i32, i32
  }
  func.func @transform_3(%arg0: i32) -> (i32, i32) {
    %c0_i32 = arith.constant 0 : i32
    %c0_i32_0 = arith.constant 0 : i32
    %c0_i32_1 = arith.constant 0 : i32
    return %c0_i32, %c0_i32_0 : i32, i32
  }
  func.func @transform_4(%arg0: i32) -> (i32, i32) {
    %c0_i32 = arith.constant 0 : i32
    %c0_i32_0 = arith.constant 0 : i32
    %c0_i32_1 = arith.constant 0 : i32
    return %c0_i32, %c0_i32_0 : i32, i32
  }
  func.func @transform_5(%arg0: i32) -> (i32, i32) {
    %c0_i32 = arith.constant 0 : i32
    %c0_i32_0 = arith.constant 0 : i32
    return %arg0, %c0_i32 : i32, i32
  }
}

module attributes {stable_mosaic.version = 11 : i64} {
  func.func @kernel(%arg0: i32, %arg1: memref<16x16x8xbf16, #tpu.memory_space<vmem>>, %arg2: memref<8x128xbf16, #tpu.memory_space<vmem>>, %arg3: memref<1x128xf32, #tpu.memory_space<vmem>>, %arg4: memref<128x128xbf16, #tpu.memory_space<vmem>>, %arg5: memref<1x128xf32, #tpu.memory_space<vmem>>, %arg6: memref<16x128xf32, #tpu.memory_space<vmem>>) attributes {dimension_semantics = [#tpu.dimension_semantics<parallel>], iteration_bounds = array<i64: 2>, scalar_prefetch = 0 : i64, scratch_operands = 0 : i64, tpu.core_type = #tpu.core_type<tc>, window_params = [{transform_indices = @transform_0, window_bounds = array<i64: 16, 16, 8>}, {pipeline_mode = #tpu.pipeline_mode<synchronous>, transform_indices = @transform_1, window_bounds = array<i64: 8, 128>}, {pipeline_mode = #tpu.pipeline_mode<synchronous>, transform_indices = @transform_2, window_bounds = array<i64: 1, 128>}, {pipeline_mode = #tpu.pipeline_mode<synchronous>, transform_indices = @transform_3, window_bounds = array<i64: 128, 128>}, {pipeline_mode = #tpu.pipeline_mode<synchronous>, transform_indices = @transform_4, window_bounds = array<i64: 1, 128>}, {transform_indices = @transform_5, window_bounds = array<i64: 16, 128>}]} {
    %c0 = arith.constant 0 : index
    %c0_0 = arith.constant 0 : index
    %c0_1 = arith.constant 0 : index
    %0 = vector.load %arg1[%c0, %c0_0, %c0_1] : memref<16x16x8xbf16, #tpu.memory_space<vmem>>, vector<16x16x8xbf16>
    %1 = vector.shape_cast %0 : vector<16x16x8xbf16> to vector<256x8xbf16>
    %c0_2 = arith.constant 0 : index
    %c0_3 = arith.constant 0 : index
    %2 = vector.load %arg2[%c0_2, %c0_3] : memref<8x128xbf16, #tpu.memory_space<vmem>>, vector<8x128xbf16>
    %cst = arith.constant dense<0.000000e+00> : vector<256x128xf32>
    %3 = tpu.matmul %1, %2, %cst {dimension_numbers = #tpu.dot_dimension_numbers<[1], [0], [0], [1], [0, 0, 1, 1], [], []>} : vector<256x8xbf16>, vector<8x128xbf16>, vector<256x128xf32> -> vector<256x128xf32>
    %c0_4 = arith.constant 0 : index
    %c0_5 = arith.constant 0 : index
    %4 = vector.load %arg3[%c0_4, %c0_5] : memref<1x128xf32, #tpu.memory_space<vmem>>, vector<1x128xf32>
    %5 = vector.broadcast %4 : vector<1x128xf32> to vector<256x128xf32>
    %6 = arith.addf %3, %5 : vector<256x128xf32>
    %cst_6 = arith.constant 0.000000e+00 : f32
    %7 = vector.broadcast %cst_6 : f32 to vector<256x128xf32>
    %8 = arith.maximumf %6, %7 : vector<256x128xf32>
    %9 = arith.truncf %8 : vector<256x128xf32> to vector<256x128xbf16>
    %c0_7 = arith.constant 0 : index
    %c0_8 = arith.constant 0 : index
    %10 = vector.load %arg4[%c0_7, %c0_8] : memref<128x128xbf16, #tpu.memory_space<vmem>>, vector<128x128xbf16>
    %cst_9 = arith.constant dense<0.000000e+00> : vector<256x128xf32>
    %11 = tpu.matmul %9, %10, %cst_9 {dimension_numbers = #tpu.dot_dimension_numbers<[1], [0], [0], [1], [0, 0, 1, 1], [], []>} : vector<256x128xbf16>, vector<128x128xbf16>, vector<256x128xf32> -> vector<256x128xf32>
    %12 = vector.shape_cast %11 : vector<256x128xf32> to vector<16x16x128xf32>
    %cst_10 = arith.constant dense<0xFF800000> : vector<16x128xf32>
    %13 = vector.multi_reduction <maximumf>, %12, %cst_10 [1] : vector<16x16x128xf32> to vector<16x128xf32>
    %c0_11 = arith.constant 0 : index
    %c0_12 = arith.constant 0 : index
    %14 = vector.load %arg5[%c0_11, %c0_12] : memref<1x128xf32, #tpu.memory_space<vmem>>, vector<1x128xf32>
    %15 = vector.broadcast %14 : vector<1x128xf32> to vector<16x128xf32>
    %16 = arith.addf %13, %15 : vector<16x128xf32>
    %cst_13 = arith.constant 0.000000e+00 : f32
    %17 = vector.broadcast %cst_13 : f32 to vector<16x128xf32>
    %18 = arith.maximumf %16, %17 : vector<16x128xf32>
    %c0_14 = arith.constant 0 : index
    %c0_15 = arith.constant 0 : index
    %19 = vector.load %arg6[%c0_14, %c0_15] : memref<16x128xf32, #tpu.memory_space<vmem>>, vector<16x128xf32>
    tpu.vector_store %arg6[%c0_14, %c0_15], %18 {strides = array<i32>} : memref<16x128xf32, #tpu.memory_space<vmem>>, vector<16x128xf32>,
    return
  }
  func.func @transform_0(%arg0: i32) -> (i32, i32, i32) {
    %c0_i32 = arith.constant 0 : i32
    %c0_i32_0 = arith.constant 0 : i32
    %c0_i32_1 = arith.constant 0 : i32
    return %arg0, %c0_i32, %c0_i32_0 : i32, i32, i32
  }
  func.func @transform_1(%arg0: i32) -> (i32, i32) {
    %c0_i32 = arith.constant 0 : i32
    %c0_i32_0 = arith.constant 0 : i32
    %c0_i32_1 = arith.constant 0 : i32
    return %c0_i32, %c0_i32_0 : i32, i32
  }
  func.func @transform_2(%arg0: i32) -> (i32, i32) {
    %c0_i32 = arith.constant 0 : i32
    %c0_i32_0 = arith.constant 0 : i32
    %c0_i32_1 = arith.constant 0 : i32
    return %c0_i32, %c0_i32_0 : i32, i32
  }
  func.func @transform_3(%arg0: i32) -> (i32, i32) {
    %c0_i32 = arith.constant 0 : i32
    %c0_i32_0 = arith.constant 0 : i32
    %c0_i32_1 = arith.constant 0 : i32
    return %c0_i32, %c0_i32_0 : i32, i32
  }
  func.func @transform_4(%arg0: i32) -> (i32, i32) {
    %c0_i32 = arith.constant 0 : i32
    %c0_i32_0 = arith.constant 0 : i32
    %c0_i32_1 = arith.constant 0 : i32
    return %c0_i32, %c0_i32_0 : i32, i32
  }
  func.func @transform_5(%arg0: i32) -> (i32, i32) {
    %c0_i32 = arith.constant 0 : i32
    %c0_i32_0 = arith.constant 0 : i32
    return %arg0, %c0_i32 : i32, i32
  }
}

</mosaic_0001>

<llo_original>
// kernel: tpu_custom_call.1
$region0: #{tpu_custom_call.1}
  #allocation0 [shape = 'u32[]', space=smem, size = 0x4, offset = 0x4, fixed_abs, tag = 'smem constant byte address 0x4 - core index']
  #allocation1 [shape = 'u32[144,128]{1,0:T(1,128)}', space=vmem, size = 0x12000, scoped, tag = 'internal scratch']
  %s0 = inlined_call_operand.vmem [shape: bf16[32,16,8], index: 0, kind: input, shape index: {}]
  %s1 = inlined_call_operand.vmem [shape: bf16[8,128], index: 1, kind: input, shape index: {}]
  %s2 = inlined_call_operand.vmem [shape: f32[1,128], index: 2, kind: input, shape index: {}]
  %s3 = inlined_call_operand.vmem [shape: bf16[128,128], index: 3, kind: input, shape index: {}]
  %s4 = inlined_call_operand.vmem [shape: f32[1,128], index: 4, kind: input, shape index: {}]
  %s5 = inlined_call_operand.hbm [shape: f32[32,128], index: 5, kind: output, shape index: {}]
  %s6 = sld [smem:[#allocation0]]
  $region53: #{tpu_custom_call.1} parent=0
    _
  %s8 = ssub.s32 1, %s6
  %s9 = scalar_select 0, %s8, %s6
  $region1: #{tpu_custom_call.1} parent=0
    #allocation2 [shape = 'u8[16384]{0}', space=vmem, size = 0x4000, scoped, tag = 'output window, operand 0']
    #allocation3 [shape = 's32[2]{0}', space=sflag, size = 0x8, scoped, tag = 'scoped memory for tpu_custom_call.1']
    %10 = vsyncpa [#allocation3], 0
    %s11 = scalar_lea.sflag [#allocation3], 1
    %12 = vsyncpa %s11, 0
    loop: start=0, step=1, limit=4
    $region2: #{tpu_custom_call.1} parent=1 // loop_pre_header
      _
    $region3: #{tpu_custom_call.1} parent=1 // loop_header
      %s14 = sphi 0, %s18
      %p15 = scmp.ge.s32.totalorder %s14, 4
      %s24 = sphi 0, %s26
      %s27 = sphi 0, %s24
      %s28 = sphi 0, %s27
      %s44 = sphi 0, %s28
      %s48 = sphi 0, %s48
      %s50 = sphi 0, %s48
      %s51 = sphi 0, %s50
      %s65 = sphi 0, %s51
      %s69 = sphi 0, %s69
      %s71 = sphi 0, %s69
      %s72 = sphi 0, %s71
      %s86 = sphi 0, %s72
      %s90 = sphi 0, %s90
      %s92 = sphi 0, %s90
      %s93 = sphi 0, %s92
      %s107 = sphi 0, %s93
      %s111 = sphi 0, %s111
      %s113 = sphi 0, %s111
      %s114 = sphi 0, %s113
      %s128 = sphi 0, %s114
      %s134 = sphi 0, %s136
      %s137 = sphi 0, %s134
      %s138 = sphi 0, %s137
      %s154 = sphi 0, %s138
    $region4: #{tpu_custom_call.1} parent=1 // loop_header_branch
      %17 = sbr.rel (%p15) target = $region8
    $region5: #{tpu_custom_call.1} parent=1 // loop_body
      %s19 = ssub.s32 %s14, 1
      %s20 = ssub.s32 %s14, 2
      %s21 = sadd.s32 %s14, 1
      %s22 = ssub.s32 %s14, %s21
      %p23 = scmp.eq.s32.totalorder %s22, 0
      %s25 = sadd.s32 %s24, 1
      %s26 = scalar_select %p23, %s24, %s25
      %p29 = pneg %p23
      %p30 = scmp.eq.s32.totalorder %s14, 1
      %p31 = por %p29, %p30
      %p32 = scmp.ne.s32.totalorder %s24, %s27
      %p33 = scmp.eq.s32.totalorder %s14, 0
      %p34 = por %p32, %p33
      %p35 = scmp.ne.s32.totalorder %s24, %s27
      %p36 = scmp.eq.s32.totalorder %s19, 1
      %p37 = por %p35, %p36
      %p38 = scmp.ne.s32.totalorder %s27, %s28
      %p39 = scmp.eq.s32.totalorder %s19, 0
      %p40 = por %p38, %p39
      %p41 = scmp.ne.s32.totalorder %s27, %s28
      %p42 = scmp.eq.s32.totalorder %s20, 1
      %p43 = por %p41, %p42
      %p45 = scmp.ne.s32.totalorder %s28, %s44
      %p46 = scmp.eq.s32.totalorder %s20, 0
      %p47 = por %p45, %p46
      %s49 = sadd.s32 %s48, 1
      %p52 = scmp.eq.s32.totalorder %s14, 1
      %p53 = scmp.ne.s32.totalorder %s48, %s50
      %p54 = scmp.eq.s32.totalorder %s14, 0
      %p55 = por %p53, %p54
      %p56 = scmp.ne.s32.totalorder %s48, %s50
      %p57 = scmp.eq.s32.totalorder %s19, 1
      %p58 = por %p56, %p57
      %p59 = scmp.ne.s32.totalorder %s50, %s51
      %p60 = scmp.eq.s32.totalorder %s19, 0
      %p61 = por %p59, %p60
      %p62 = scmp.ne.s32.totalorder %s50, %s51
      %p63 = scmp.eq.s32.totalorder %s20, 1
      %p64 = por %p62, %p63
      %p66 = scmp.ne.s32.totalorder %s51, %s65
      %p67 = scmp.eq.s32.totalorder %s20, 0
      %p68 = por %p66, %p67
      %s70 = sadd.s32 %s69, 1
      %p73 = scmp.eq.s32.totalorder %s14, 1
      %p74 = scmp.ne.s32.totalorder %s69, %s71
      %p75 = scmp.eq.s32.totalorder %s14, 0
      %p76 = por %p74, %p75
      %p77 = scmp.ne.s32.totalorder %s69, %s71
      %p78 = scmp.eq.s32.totalorder %s19, 1
      %p79 = por %p77, %p78
      %p80 = scmp.ne.s32.totalorder %s71, %s72
      %p81 = scmp.eq.s32.totalorder %s19, 0
      %p82 = por %p80, %p81
      %p83 = scmp.ne.s32.totalorder %s71, %s72
      %p84 = scmp.eq.s32.totalorder %s20, 1
      %p85 = por %p83, %p84
      %p87 = scmp.ne.s32.totalorder %s72, %s86
      %p88 = scmp.eq.s32.totalorder %s20, 0
      %p89 = por %p87, %p88
      %s91 = sadd.s32 %s90, 1
      %p94 = scmp.eq.s32.totalorder %s14, 1
      %p95 = scmp.ne.s32.totalorder %s90, %s92
      %p96 = scmp.eq.s32.totalorder %s14, 0
      %p97 = por %p95, %p96
      %p98 = scmp.ne.s32.totalorder %s90, %s92
      %p99 = scmp.eq.s32.totalorder %s19, 1
      %p100 = por %p98, %p99
      %p101 = scmp.ne.s32.totalorder %s92, %s93
      %p102 = scmp.eq.s32.totalorder %s19, 0
      %p103 = por %p101, %p102
      %p104 = scmp.ne.s32.totalorder %s92, %s93
      %p105 = scmp.eq.s32.totalorder %s20, 1
      %p106 = por %p104, %p105
      %p108 = scmp.ne.s32.totalorder %s93, %s107
      %p109 = scmp.eq.s32.totalorder %s20, 0
      %p110 = por %p108, %p109
      %s112 = sadd.s32 %s111, 1
      %p115 = scmp.eq.s32.totalorder %s14, 1
      %p116 = scmp.ne.s32.totalorder %s111, %s113
      %p117 = scmp.eq.s32.totalorder %s14, 0
      %p118 = por %p116, %p117
      %p119 = scmp.ne.s32.totalorder %s111, %s113
      %p120 = scmp.eq.s32.totalorder %s19, 1
      %p121 = por %p119, %p120
      %p122 = scmp.ne.s32.totalorder %s113, %s114
      %p123 = scmp.eq.s32.totalorder %s19, 0
      %p124 = por %p122, %p123
      %p125 = scmp.ne.s32.totalorder %s113, %s114
      %p126 = scmp.eq.s32.totalorder %s20, 1
      %p127 = por %p125, %p126
      %p129 = scmp.ne.s32.totalorder %s114, %s128
      %p130 = scmp.eq.s32.totalorder %s20, 0
      %p131 = por %p129, %p130
      %s132 = ssub.s32 %s14, %s21
      %p133 = scmp.eq.s32.totalorder %s132, 0
      %s135 = sadd.s32 %s134, 1
      %s136 = scalar_select %p133, %s134, %s135
      %p139 = pneg %p133
      %p140 = scmp.eq.s32.totalorder %s14, 1
      %p141 = por %p139, %p140
      %p142 = scmp.ne.s32.totalorder %s134, %s137
      %p143 = scmp.eq.s32.totalorder %s14, 0
      %p144 = por %p142, %p143
      %p145 = scmp.ne.s32.totalorder %s134, %s137
      %p146 = scmp.eq.s32.totalorder %s19, 1
      %p147 = por %p145, %p146
      %p148 = scmp.ne.s32.totalorder %s137, %s138
      %p149 = scmp.eq.s32.totalorder %s19, 0
      %p150 = por %p148, %p149
      %p151 = scmp.ne.s32.totalorder %s137, %s138
      %p152 = scmp.eq.s32.totalorder %s20, 1
      %p153 = por %p151, %p152
      %p155 = scmp.ne.s32.totalorder %s138, %s154
      %p156 = scmp.eq.s32.totalorder %s20, 0
      %p157 = por %p155, %p156
      %p158 = scmp.le.s32.totalorder 1, %s14
      %p159 = scmp.lt.s32.totalorder %s14, 3
      %p160 = pnand %p158, %p159
      %p161 = pneg %p160
      // Predicated region
      $region9: #{tpu_custom_call.1} parent=5 // pred_check
        _
      $region10: #{tpu_custom_call.1} parent=5 // pred_check_branch
        %163 = sbr.rel (%p160) target = $region12
      $region11: #{tpu_custom_call.1} parent=5 // pred_region
        %s164 = ssub.s32 %s14, 1
        // Predicated region
        $region13: #{tpu_custom_call.1} parent=11 // pred_check
          %p165 = pneg %p61
        $region14: #{tpu_custom_call.1} parent=11 // pred_check_branch
          %167 = sbr.rel (%p165) target = $region16
        $region15: #{tpu_custom_call.1} parent=11 // pred_region
          _
        $region16: #{tpu_custom_call.1} parent=11 // pred_fallthru
          _
        // Predicated region
        $region17: #{tpu_custom_call.1} parent=11 // pred_check
          %p168 = pneg %p82
        $region18: #{tpu_custom_call.1} parent=11 // pred_check_branch
          %170 = sbr.rel (%p168) target = $region20
        $region19: #{tpu_custom_call.1} parent=11 // pred_region
          _
        $region20: #{tpu_custom_call.1} parent=11 // pred_fallthru
          _
        // Predicated region
        $region21: #{tpu_custom_call.1} parent=11 // pred_check
          %p171 = pneg %p103
        $region22: #{tpu_custom_call.1} parent=11 // pred_check_branch
          %173 = sbr.rel (%p171) target = $region24
        $region23: #{tpu_custom_call.1} parent=11 // pred_region
          _
        $region24: #{tpu_custom_call.1} parent=11 // pred_fallthru
          _
        // Predicated region
        $region25: #{tpu_custom_call.1} parent=11 // pred_check
          %p174 = pneg %p124
        $region26: #{tpu_custom_call.1} parent=11 // pred_check_branch
          %176 = sbr.rel (%p174) target = $region28
        $region27: #{tpu_custom_call.1} parent=11 // pred_region
          _
        $region28: #{tpu_custom_call.1} parent=11 // pred_fallthru
          _
      $region12: #{tpu_custom_call.1} parent=5 // pred_fallthru
        _
      %p177 = scmp.lt.s32.totalorder %s14, 2
      // Predicated region
      $region29: #{tpu_custom_call.1} parent=5 // pred_check
        %p178 = pneg %p177
      $region30: #{tpu_custom_call.1} parent=5 // pred_check_branch
        %180 = sbr.rel (%p178) target = $region32
      $region31: #{tpu_custom_call.1} parent=5 // pred_region
        // Predicated region
        $region33: #{tpu_custom_call.1} parent=31 // pred_check
          %p181 = pneg %p34
        $region34: #{tpu_custom_call.1} parent=31 // pred_check_branch
          %183 = sbr.rel (%p181) target = $region36
        $region35: #{tpu_custom_call.1} parent=31 // pred_region
          %s184 = smul.u32 16, %s14
          %p185 = scmp.lt.s32.totalorder %s184, 31
          %s186 = scalar_select %p185, %s184, 31
          %s187 = smul.addr %s186, 2
          %s188 = smul.addr %s187, 4
          %s189 = scalar_lea.vmem %s0, %s188
          %s190 = smul.u32 16, %s14
        $region36: #{tpu_custom_call.1} parent=31 // pred_fallthru
          _
      $region32: #{tpu_custom_call.1} parent=5 // pred_fallthru
        _
      %p191 = scmp.le.s32.totalorder 1, %s14
      %p192 = scmp.lt.s32.totalorder %s14, 3
      %p193 = pnand %p191, %p192
      %p194 = pneg %p193
      // Predicated region
      $region37: #{tpu_custom_call.1} parent=5 // pred_check
        _
      $region38: #{tpu_custom_call.1} parent=5 // pred_check_branch
        %196 = sbr.rel (%p193) target = $region40
      $region39: #{tpu_custom_call.1} parent=5 // pred_region
        %s197 = ssub.s32 %s14, 1
        %s198 = smul.u32 16, %s19
        %p199 = scmp.lt.s32.totalorder %s198, 31
        %s200 = scalar_select %p199, %s198, 31
        %s201 = smul.addr %s200, 2
        %s202 = smul.addr %s201, 4
        %s203 = scalar_lea.vmem %s0, %s202
        %p204 = pneg %p40
        %p205 = pneg %p37
        %p206 = pneg %p61
        %p207 = pneg %p58
        %p208 = pneg %p82
        %p209 = pneg %p79
        %p210 = pneg %p103
        %p211 = pneg %p100
        %p212 = pneg %p124
        %p213 = pneg %p121
        %p214 = pneg %p150
        %p215 = pneg %p147
        %s216 = sand.u32 %s137, 1
        %s217 = scalar_lea.sflag [#allocation3], %s216
        %s218 = sand.u32 %s137, 1
        %s219 = smul.addr %s218, 16
        %s220 = scalar_lea.vmem [#allocation2], %s219
        %s221 = smul.u32 16, %s19
        %p222 = scmp.lt.s32.totalorder %s221, 31
        %s223 = scalar_select %p222, %s221, 31
        %s224 = smul.addr %s223, 2
        %s225 = smul.addr %s224, 4
        %s226 = scalar_lea.vmem %s0, %s225
        %s227 = smul.u32 16, %s19
        %s228 = smul.u32 2, %s19
        %v230 = vld [vmem:[%s226] sm:$0xf]
        %v231 = vld [vmem:[%s226 + $0x4] sm:$0xf]
        %v232 = vld [vmem:[%s226 + $0x8] sm:$0xf]
        %v233 = vld [vmem:[%s226 + $0xc] sm:$0xf]
        %v234 = vld [vmem:[%s226 + $0x10] sm:$0xf]
        %v235 = vld [vmem:[%s226 + $0x14] sm:$0xf]
        %v236 = vld [vmem:[%s226 + $0x18] sm:$0xf]
        %v237 = vld [vmem:[%s226 + $0x1c] sm:$0xf]
        %v238 = vld [vmem:[%s226 + $0x20] sm:$0xf]
        %v239 = vld [vmem:[%s226 + $0x24] sm:$0xf]
        %v240 = vld [vmem:[%s226 + $0x28] sm:$0xf]
        %v241 = vld [vmem:[%s226 + $0x2c] sm:$0xf]
        %v242 = vld [vmem:[%s226 + $0x30] sm:$0xf]
        %v243 = vld [vmem:[%s226 + $0x34] sm:$0xf]
        %v244 = vld [vmem:[%s226 + $0x38] sm:$0xf]
        %v245 = vld [vmem:[%s226 + $0x3c] sm:$0xf]
        %v246 = vld [vmem:[%s226 + $0x40] sm:$0xf]
        %v247 = vld [vmem:[%s226 + $0x44] sm:$0xf]
        %v248 = vld [vmem:[%s226 + $0x48] sm:$0xf]
        %v249 = vld [vmem:[%s226 + $0x4c] sm:$0xf]
        %v250 = vld [vmem:[%s226 + $0x50] sm:$0xf]
        %v251 = vld [vmem:[%s226 + $0x54] sm:$0xf]
        %v252 = vld [vmem:[%s226 + $0x58] sm:$0xf]
        %v253 = vld [vmem:[%s226 + $0x5c] sm:$0xf]
        %v254 = vld [vmem:[%s226 + $0x60] sm:$0xf]
        %v255 = vld [vmem:[%s226 + $0x64] sm:$0xf]
        %v256 = vld [vmem:[%s226 + $0x68] sm:$0xf]
        %v257 = vld [vmem:[%s226 + $0x6c] sm:$0xf]
        %v258 = vld [vmem:[%s226 + $0x70] sm:$0xf]
        %v259 = vld [vmem:[%s226 + $0x74] sm:$0xf]
        %v260 = vld [vmem:[%s226 + $0x78] sm:$0xf]
        %v261 = vld [vmem:[%s226 + $0x7c] sm:$0xf]
        %v262 = vld [vmem:[%s1] sm:$0xf]
        %v263 = vld [vmem:[%s2] sm:$0x1]
        %v265 = vlaneseq
        %v266 = vshrl.u32 %v265, 7
        %v267 = vsub.s32 0, %v266
        %v268 = vrot.slane %v263, %v267
        %v302 = vunpack.c.l.b16 %v230
        %v303 = vunpack.c.l.b16 %v231
        %v304 = vunpack.c.l.b16 %v232
        %v305 = vunpack.c.l.b16 %v233
        %v306 = vunpack.c.l.b16 %v234
        %v307 = vunpack.c.l.b16 %v235
        %v308 = vunpack.c.l.b16 %v236
        %v309 = vunpack.c.l.b16 %v237
        %v310 = vunpack.c.l.b16 %v238
        %v311 = vunpack.c.l.b16 %v239
        %v312 = vunpack.c.l.b16 %v240
        %v313 = vunpack.c.l.b16 %v241
        %v314 = vunpack.c.l.b16 %v242
        %v315 = vunpack.c.l.b16 %v243
        %v316 = vunpack.c.l.b16 %v244
        %v317 = vunpack.c.l.b16 %v245
        %v318 = vunpack.c.l.b16 %v246
        %v319 = vunpack.c.l.b16 %v247
        %v320 = vunpack.c.l.b16 %v248
        %v321 = vunpack.c.l.b16 %v249
        %v322 = vunpack.c.l.b16 %v250
        %v323 = vunpack.c.l.b16 %v251
        %v324 = vunpack.c.l.b16 %v252
        %v325 = vunpack.c.l.b16 %v253
        %v326 = vunpack.c.l.b16 %v254
        %v327 = vunpack.c.l.b16 %v255
        %v328 = vunpack.c.l.b16 %v256
        %v329 = vunpack.c.l.b16 %v257
        %v330 = vunpack.c.l.b16 %v258
        %v331 = vunpack.c.l.b16 %v259
        %v332 = vunpack.c.l.b16 %v260
        %v333 = vunpack.c.l.b16 %v261
        %v334 = vpack.c.b16 %v303, %v302
        %v335 = vpack.c.b16 %v305, %v304
        %v336 = vpack.c.b16 %v307, %v306
        %v337 = vpack.c.b16 %v309, %v308
        %v338 = vpack.c.b16 %v311, %v310
        %v339 = vpack.c.b16 %v313, %v312
        %v340 = vpack.c.b16 %v315, %v314
        %v341 = vpack.c.b16 %v317, %v316
        %v342 = vpack.c.b16 %v319, %v318
        %v343 = vpack.c.b16 %v321, %v320
        %v344 = vpack.c.b16 %v323, %v322
        %v345 = vpack.c.b16 %v325, %v324
        %v346 = vpack.c.b16 %v327, %v326
        %v347 = vpack.c.b16 %v329, %v328
        %v348 = vpack.c.b16 %v331, %v330
        %v349 = vpack.c.b16 %v333, %v332
        %vm350 = vcmask 64512
        %v352 = vsel %vm350, %v334, 0
        %v355 = vsel %vm350, %v335, 0
        %v358 = vsel %vm350, %v336, 0
        %v361 = vsel %vm350, %v337, 0
        %v364 = vsel %vm350, %v338, 0
        %v367 = vsel %vm350, %v339, 0
        %v370 = vsel %vm350, %v340, 0
        %v373 = vsel %vm350, %v341, 0
        %v376 = vsel %vm350, %v342, 0
        %v379 = vsel %vm350, %v343, 0
        %v382 = vsel %vm350, %v344, 0
        %v385 = vsel %vm350, %v345, 0
        %v388 = vsel %vm350, %v346, 0
        %v391 = vsel %vm350, %v347, 0
        %v394 = vsel %vm350, %v348, 0
        %v397 = vsel %vm350, %v349, 0
        %vm399 = vcmask 1043456
        %v401 = vsel %vm399, %v262, 0
        %403 = vmatprep.subr.bf16.mxu0 0
        %404 = vmatpush1.bf16.msra.mxu0 0
        %405 = vmatprep.subr.bf16.mxu0 0
        %406 = vmatpush1.bf16.msra.mxu0 0
        %407 = vmatprep.subr.bf16.mxu0 0
        %408 = vmatpush1.bf16.msra.mxu0 0
        %409 = vmatprep.subr.bf16.mxu0 0
        %410 = vmatpush1.bf16.msra.mxu0 0
        %411 = vmatprep.subr.bf16.mxu0 0
        %412 = vmatpush1.bf16.msra.mxu0 0
        %413 = vmatprep.subr.bf16.mxu0 0
        %414 = vmatpush1.bf16.msra.mxu0 0
        %415 = vmatprep.subr.bf16.mxu0 0
        %416 = vmatpush1.bf16.msra.mxu0 0
        %417 = vmatprep.subr.bf16.mxu0 0
        %418 = vmatpush1.bf16.msra.mxu0 %v401
        %419 = vmatprep.subr.bf16.mxu0 0
        %420 = vmatpush2.bf16.msra.mxu0 0
        %421 = vmatprep.subr.bf16.mxu0 0
        %422 = vmatpush2.bf16.msra.mxu0 0
        %423 = vmatprep.subr.bf16.mxu0 0
        %424 = vmatpush2.bf16.msra.mxu0 0
        %425 = vmatprep.subr.bf16.mxu0 0
        %426 = vmatpush2.bf16.msra.mxu0 0
        %427 = vmatprep.subr.bf16.mxu0 0
        %428 = vmatpush2.bf16.msra.mxu0 0
        %429 = vmatprep.subr.bf16.mxu0 0
        %430 = vmatpush2.bf16.msra.mxu0 0
        %431 = vmatprep.subr.bf16.mxu0 0
        %432 = vmatpush2.bf16.msra.mxu0 0
        %433 = vmatprep.subr.bf16.mxu0 0
        %434 = vmatpush2.bf16.msra.mxu0 0
        %435 = vmatprep.mubr.bf16.mxu0 0
        %436 = vmatmul.mubr.bf16.gmra.mxu0 %v352
        %v437 = vpop.f32.mrf.mxu0
        %v438 = vadd.f32 %v268, %v437
        %v439 = vpop.f32.mrf.mxu0
        %v440 = vpop.f32.mrf.mxu0
        %v441 = vadd.f32 %v268, %v440
        %v442 = vpop.f32.mrf.mxu0
        %443 = vmatprep.mubr.bf16.mxu0 0
        %444 = vmatmul.mubr.bf16.gmra.mxu0 %v355
        %v445 = vpop.f32.mrf.mxu0
        %v446 = vadd.f32 %v268, %v445
        %v447 = vpop.f32.mrf.mxu0
        %v448 = vpop.f32.mrf.mxu0
        %v449 = vadd.f32 %v268, %v448
        %v450 = vpop.f32.mrf.mxu0
        %451 = vmatprep.mubr.bf16.mxu0 0
        %452 = vmatmul.mubr.bf16.gmra.mxu0 %v358
        %v453 = vpop.f32.mrf.mxu0
        %v454 = vadd.f32 %v268, %v453
        %v455 = vpop.f32.mrf.mxu0
        %v456 = vpop.f32.mrf.mxu0
        %v457 = vadd.f32 %v268, %v456
        %v458 = vpop.f32.mrf.mxu0
        %459 = vmatprep.mubr.bf16.mxu0 0
        %460 = vmatmul.mubr.bf16.gmra.mxu0 %v361
        %v461 = vpop.f32.mrf.mxu0
        %v462 = vadd.f32 %v268, %v461
        %v463 = vpop.f32.mrf.mxu0
        %v464 = vpop.f32.mrf.mxu0
        %v465 = vadd.f32 %v268, %v464
        %v466 = vpop.f32.mrf.mxu0
        %467 = vmatprep.mubr.bf16.mxu0 0
        %468 = vmatmul.mubr.bf16.gmra.mxu0 %v364
        %v469 = vpop.f32.mrf.mxu0
        %v470 = vadd.f32 %v268, %v469
        %v471 = vpop.f32.mrf.mxu0
        %v472 = vpop.f32.mrf.mxu0
        %v473 = vadd.f32 %v268, %v472
        %v474 = vpop.f32.mrf.mxu0
        %475 = vmatprep.mubr.bf16.mxu0 0
        %476 = vmatmul.mubr.bf16.gmra.mxu0 %v367
        %v477 = vpop.f32.mrf.mxu0
        %v478 = vadd.f32 %v268, %v477
        %v479 = vpop.f32.mrf.mxu0
        %v480 = vpop.f32.mrf.mxu0
        %v481 = vadd.f32 %v268, %v480
        %v482 = vpop.f32.mrf.mxu0
        %483 = vmatprep.mubr.bf16.mxu0 0
        %484 = vmatmul.mubr.bf16.gmra.mxu0 %v370
        %v485 = vpop.f32.mrf.mxu0
        %v486 = vadd.f32 %v268, %v485
        %v487 = vpop.f32.mrf.mxu0
        %v488 = vpop.f32.mrf.mxu0
        %v489 = vadd.f32 %v268, %v488
        %v490 = vpop.f32.mrf.mxu0
        %491 = vmatprep.mubr.bf16.mxu0 0
        %492 = vmatmul.mubr.bf16.gmra.mxu0 %v373
        %v493 = vpop.f32.mrf.mxu0
        %v494 = vadd.f32 %v268, %v493
        %v495 = vpop.f32.mrf.mxu0
        %v496 = vpop.f32.mrf.mxu0
        %v497 = vadd.f32 %v268, %v496
        %v498 = vpop.f32.mrf.mxu0
        %499 = vmatprep.mubr.bf16.mxu0 0
        %500 = vmatmul.mubr.bf16.gmra.mxu0 %v376
        %v501 = vpop.f32.mrf.mxu0
        %v502 = vadd.f32 %v268, %v501
        %v503 = vpop.f32.mrf.mxu0
        %v504 = vpop.f32.mrf.mxu0
        %v505 = vadd.f32 %v268, %v504
        %v506 = vpop.f32.mrf.mxu0
        %507 = vmatprep.mubr.bf16.mxu0 0
        %508 = vmatmul.mubr.bf16.gmra.mxu0 %v379
        %v509 = vpop.f32.mrf.mxu0
        %v510 = vadd.f32 %v268, %v509
        %v511 = vpop.f32.mrf.mxu0
        %v512 = vpop.f32.mrf.mxu0
        %v513 = vadd.f32 %v268, %v512
        %v514 = vpop.f32.mrf.mxu0
        %515 = vmatprep.mubr.bf16.mxu0 0
        %516 = vmatmul.mubr.bf16.gmra.mxu0 %v382
        %v517 = vpop.f32.mrf.mxu0
        %v518 = vadd.f32 %v268, %v517
        %v519 = vpop.f32.mrf.mxu0
        %v520 = vpop.f32.mrf.mxu0
        %v521 = vadd.f32 %v268, %v520
        %v522 = vpop.f32.mrf.mxu0
        %523 = vmatprep.mubr.bf16.mxu0 0
        %524 = vmatmul.mubr.bf16.gmra.mxu0 %v385
        %v525 = vpop.f32.mrf.mxu0
        %v526 = vadd.f32 %v268, %v525
        %v527 = vpop.f32.mrf.mxu0
        %v528 = vpop.f32.mrf.mxu0
        %v529 = vadd.f32 %v268, %v528
        %v530 = vpop.f32.mrf.mxu0
        %531 = vmatprep.mubr.bf16.mxu0 0
        %532 = vmatmul.mubr.bf16.gmra.mxu0 %v388
        %v533 = vpop.f32.mrf.mxu0
        %v534 = vadd.f32 %v268, %v533
        %v535 = vpop.f32.mrf.mxu0
        %v536 = vpop.f32.mrf.mxu0
        %v537 = vadd.f32 %v268, %v536
        %v538 = vpop.f32.mrf.mxu0
        %539 = vmatprep.mubr.bf16.mxu0 0
        %540 = vmatmul.mubr.bf16.gmra.mxu0 %v391
        %v541 = vpop.f32.mrf.mxu0
        %v542 = vadd.f32 %v268, %v541
        %v543 = vpop.f32.mrf.mxu0
        %v544 = vpop.f32.mrf.mxu0
        %v545 = vadd.f32 %v268, %v544
        %v546 = vpop.f32.mrf.mxu0
        %547 = vmatprep.mubr.bf16.mxu0 0
        %548 = vmatmul.mubr.bf16.gmra.mxu0 %v394
        %v549 = vpop.f32.mrf.mxu0
        %v550 = vadd.f32 %v268, %v549
        %v551 = vpop.f32.mrf.mxu0
        %v552 = vpop.f32.mrf.mxu0
        %v553 = vadd.f32 %v268, %v552
        %v554 = vpop.f32.mrf.mxu0
        %555 = vmatprep.mubr.bf16.mxu0 0
        %556 = vmatmul.mubr.bf16.gmra.mxu0 %v397
        %v557 = vpop.f32.mrf.mxu0
        %v558 = vadd.f32 %v268, %v557
        %v559 = vpop.f32.mrf.mxu0
        %v560 = vpop.f32.mrf.mxu0
        %v561 = vadd.f32 %v268, %v560
        %v562 = vpop.f32.mrf.mxu0
        %563 = vdwg.mxu0
        %v564 = vmax.f32 %v438, 0.0
        %v565 = vmax.f32 %v441, 0.0
        %v566 = vmax.f32 %v446, 0.0
        %v567 = vmax.f32 %v449, 0.0
        %v568 = vmax.f32 %v454, 0.0
        %v569 = vmax.f32 %v457, 0.0
        %v570 = vmax.f32 %v462, 0.0
        %v571 = vmax.f32 %v465, 0.0
        %v572 = vmax.f32 %v470, 0.0
        %v573 = vmax.f32 %v473, 0.0
        %v574 = vmax.f32 %v478, 0.0
        %v575 = vmax.f32 %v481, 0.0
        %v576 = vmax.f32 %v486, 0.0
        %v577 = vmax.f32 %v489, 0.0
        %v578 = vmax.f32 %v494, 0.0
        %v579 = vmax.f32 %v497, 0.0
        %v580 = vmax.f32 %v502, 0.0
        %v581 = vmax.f32 %v505, 0.0
        %v582 = vmax.f32 %v510, 0.0
        %v583 = vmax.f32 %v513, 0.0
        %v584 = vmax.f32 %v518, 0.0
        %v585 = vmax.f32 %v521, 0.0
        %v586 = vmax.f32 %v526, 0.0
        %v587 = vmax.f32 %v529, 0.0
        %v588 = vmax.f32 %v534, 0.0
        %v589 = vmax.f32 %v537, 0.0
        %v590 = vmax.f32 %v542, 0.0
        %v591 = vmax.f32 %v545, 0.0
        %v592 = vmax.f32 %v550, 0.0
        %v593 = vmax.f32 %v553, 0.0
        %v594 = vmax.f32 %v558, 0.0
        %v595 = vmax.f32 %v561, 0.0
        %v596 = vpack.c.bf16 %v565, %v564
        %v597 = vpack.c.bf16 %v567, %v566
        %v598 = vpack.c.bf16 %v569, %v568
        %v599 = vpack.c.bf16 %v571, %v570
        %v600 = vpack.c.bf16 %v573, %v572
        %v601 = vpack.c.bf16 %v575, %v574
        %v602 = vpack.c.bf16 %v577, %v576
        %v603 = vpack.c.bf16 %v579, %v578
        %v604 = vpack.c.bf16 %v581, %v580
        %v605 = vpack.c.bf16 %v583, %v582
        %v606 = vpack.c.bf16 %v585, %v584
        %v607 = vpack.c.bf16 %v587, %v586
        %v608 = vpack.c.bf16 %v589, %v588
        %v609 = vpack.c.bf16 %v591, %v590
        %v610 = vpack.c.bf16 %v593, %v592
        %v611 = vpack.c.bf16 %v595, %v594
        %v612 = vld [vmem:[%s3] sm:$0xf]
        %v613 = vld [vmem:[%s3 + $0x4] sm:$0xf]
        %v614 = vld [vmem:[%s3 + $0x8] sm:$0xf]
        %v615 = vld [vmem:[%s3 + $0xc] sm:$0xf]
        %v616 = vld [vmem:[%s3 + $0x10] sm:$0xf]
        %v617 = vld [vmem:[%s3 + $0x14] sm:$0xf]
        %v618 = vld [vmem:[%s3 + $0x18] sm:$0xf]
        %v619 = vld [vmem:[%s3 + $0x1c] sm:$0xf]
        %v620 = vld [vmem:[%s3 + $0x20] sm:$0xf]
        %v621 = vld [vmem:[%s3 + $0x24] sm:$0xf]
        %v622 = vld [vmem:[%s3 + $0x28] sm:$0xf]
        %v623 = vld [vmem:[%s3 + $0x2c] sm:$0xf]
        %v624 = vld [vmem:[%s3 + $0x30] sm:$0xf]
        %v625 = vld [vmem:[%s3 + $0x34] sm:$0xf]
        %v626 = vld [vmem:[%s3 + $0x38] sm:$0xf]
        %v627 = vld [vmem:[%s3 + $0x3c] sm:$0xf]
        %v644 = vunpack.c.l.b16 %v612
        %v645 = vunpack.c.l.b16 %v613
        %v646 = vunpack.c.l.b16 %v614
        %v647 = vunpack.c.l.b16 %v615
        %v648 = vunpack.c.l.b16 %v616
        %v649 = vunpack.c.l.b16 %v617
        %v650 = vunpack.c.l.b16 %v618
        %v651 = vunpack.c.l.b16 %v619
        %v652 = vunpack.c.l.b16 %v620
        %v653 = vunpack.c.l.b16 %v621
        %v654 = vunpack.c.l.b16 %v622
        %v655 = vunpack.c.l.b16 %v623
        %v656 = vunpack.c.l.b16 %v624
        %v657 = vunpack.c.l.b16 %v625
        %v658 = vunpack.c.l.b16 %v626
        %v659 = vunpack.c.l.b16 %v627
        %v660 = vpack.c.b16 %v645, %v644
        %v661 = vpack.c.b16 %v647, %v646
        %v662 = vpack.c.b16 %v649, %v648
        %v663 = vpack.c.b16 %v651, %v650
        %v664 = vpack.c.b16 %v653, %v652
        %v665 = vpack.c.b16 %v655, %v654
        %v666 = vpack.c.b16 %v657, %v656
        %v667 = vpack.c.b16 %v659, %v658
        %676 = vmatprep.subr.bf16.mxu0 0
        %677 = vmatpush1.bf16.msra.mxu0 %v667
        %678 = vmatprep.subr.bf16.mxu0 0
        %679 = vmatpush1.bf16.msra.mxu0 %v666
        %680 = vmatprep.subr.bf16.mxu0 0
        %681 = vmatpush1.bf16.msra.mxu0 %v665
        %682 = vmatprep.subr.bf16.mxu0 0
        %683 = vmatpush1.bf16.msra.mxu0 %v664
        %684 = vmatprep.subr.bf16.mxu0 0
        %685 = vmatpush1.bf16.msra.mxu0 %v663
        %686 = vmatprep.subr.bf16.mxu0 0
        %687 = vmatpush1.bf16.msra.mxu0 %v662
        %688 = vmatprep.subr.bf16.mxu0 0
        %689 = vmatpush1.bf16.msra.mxu0 %v661
        %690 = vmatprep.subr.bf16.mxu0 0
        %691 = vmatpush1.bf16.msra.mxu0 %v660
        %692 = vmatprep.subr.bf16.mxu0 0
        %693 = vmatpush2.bf16.msra.mxu0 0
        %694 = vmatprep.subr.bf16.mxu0 0
        %695 = vmatpush2.bf16.msra.mxu0 0
        %696 = vmatprep.subr.bf16.mxu0 0
        %697 = vmatpush2.bf16.msra.mxu0 0
        %698 = vmatprep.subr.bf16.mxu0 0
        %699 = vmatpush2.bf16.msra.mxu0 0
        %700 = vmatprep.subr.bf16.mxu0 0
        %701 = vmatpush2.bf16.msra.mxu0 0
        %702 = vmatprep.subr.bf16.mxu0 0
        %703 = vmatpush2.bf16.msra.mxu0 0
        %704 = vmatprep.subr.bf16.mxu0 0
        %705 = vmatpush2.bf16.msra.mxu0 0
        %706 = vmatprep.subr.bf16.mxu0 0
        %707 = vmatpush2.bf16.msra.mxu0 0
        %708 = vmatprep.mubr.bf16.mxu0 0
        %709 = vmatmul.mubr.bf16.gmra.mxu0 %v596
        %v710 = vpop.f32.mrf.mxu0
        %v711 = vadd.f32 0.0, %v710
        %v712 = vpop.f32.mrf.mxu0
        %v713 = vpop.f32.mrf.mxu0
        %v714 = vadd.f32 0.0, %v713
        %v715 = vpop.f32.mrf.mxu0
        %716 = vmatprep.mubr.bf16.mxu0 0
        %717 = vmatmul.mubr.bf16.gmra.mxu0 %v597
        %v718 = vpop.f32.mrf.mxu0
        %v719 = vadd.f32 0.0, %v718
        %v720 = vpop.f32.mrf.mxu0
        %v721 = vpop.f32.mrf.mxu0
        %v722 = vadd.f32 0.0, %v721
        %v723 = vpop.f32.mrf.mxu0
        %724 = vmatprep.mubr.bf16.mxu0 0
        %725 = vmatmul.mubr.bf16.gmra.mxu0 %v598
        %v726 = vpop.f32.mrf.mxu0
        %v727 = vadd.f32 0.0, %v726
        %v728 = vpop.f32.mrf.mxu0
        %v729 = vpop.f32.mrf.mxu0
        %v730 = vadd.f32 0.0, %v729
        %v731 = vpop.f32.mrf.mxu0
        %732 = vmatprep.mubr.bf16.mxu0 0
        %733 = vmatmul.mubr.bf16.gmra.mxu0 %v599
        %v734 = vpop.f32.mrf.mxu0
        %v735 = vadd.f32 0.0, %v734
        %v736 = vpop.f32.mrf.mxu0
        %v737 = vpop.f32.mrf.mxu0
        %v738 = vadd.f32 0.0, %v737
        %v739 = vpop.f32.mrf.mxu0
        %740 = vmatprep.mubr.bf16.mxu0 0
        %741 = vmatmul.mubr.bf16.gmra.mxu0 %v600
        %v742 = vpop.f32.mrf.mxu0
        %v743 = vadd.f32 0.0, %v742
        %v744 = vpop.f32.mrf.mxu0
        %v745 = vpop.f32.mrf.mxu0
        %v746 = vadd.f32 0.0, %v745
        %v747 = vpop.f32.mrf.mxu0
        %748 = vmatprep.mubr.bf16.mxu0 0
        %749 = vmatmul.mubr.bf16.gmra.mxu0 %v601
        %v750 = vpop.f32.mrf.mxu0
        %v751 = vadd.f32 0.0, %v750
        %v752 = vpop.f32.mrf.mxu0
        %v753 = vpop.f32.mrf.mxu0
        %v754 = vadd.f32 0.0, %v753
        %v755 = vpop.f32.mrf.mxu0
        %756 = vmatprep.mubr.bf16.mxu0 0
        %757 = vmatmul.mubr.bf16.gmra.mxu0 %v602
        %v758 = vpop.f32.mrf.mxu0
        %v759 = vadd.f32 0.0, %v758
        %v760 = vpop.f32.mrf.mxu0
        %v761 = vpop.f32.mrf.mxu0
        %v762 = vadd.f32 0.0, %v761
        %v763 = vpop.f32.mrf.mxu0
        %764 = vmatprep.mubr.bf16.mxu0 0
        %765 = vmatmul.mubr.bf16.gmra.mxu0 %v603
        %v766 = vpop.f32.mrf.mxu0
        %v767 = vadd.f32 0.0, %v766
        %v768 = vpop.f32.mrf.mxu0
        %v769 = vpop.f32.mrf.mxu0
        %v770 = vadd.f32 0.0, %v769
        %v771 = vpop.f32.mrf.mxu0
        %772 = vmatprep.mubr.bf16.mxu0 0
        %773 = vmatmul.mubr.bf16.gmra.mxu0 %v604
        %v774 = vpop.f32.mrf.mxu0
        %v775 = vadd.f32 0.0, %v774
        %v776 = vpop.f32.mrf.mxu0
        %v777 = vpop.f32.mrf.mxu0
        %v778 = vadd.f32 0.0, %v777
        %v779 = vpop.f32.mrf.mxu0
        %780 = vmatprep.mubr.bf16.mxu0 0
        %781 = vmatmul.mubr.bf16.gmra.mxu0 %v605
        %v782 = vpop.f32.mrf.mxu0
        %v783 = vadd.f32 0.0, %v782
        %v784 = vpop.f32.mrf.mxu0
        %v785 = vpop.f32.mrf.mxu0
        %v786 = vadd.f32 0.0, %v785
        %v787 = vpop.f32.mrf.mxu0
        %788 = vmatprep.mubr.bf16.mxu0 0
        %789 = vmatmul.mubr.bf16.gmra.mxu0 %v606
        %v790 = vpop.f32.mrf.mxu0
        %v791 = vadd.f32 0.0, %v790
        %v792 = vpop.f32.mrf.mxu0
        %v793 = vpop.f32.mrf.mxu0
        %v794 = vadd.f32 0.0, %v793
        %v795 = vpop.f32.mrf.mxu0
        %796 = vmatprep.mubr.bf16.mxu0 0
        %797 = vmatmul.mubr.bf16.gmra.mxu0 %v607
        %v798 = vpop.f32.mrf.mxu0
        %v799 = vadd.f32 0.0, %v798
        %v800 = vpop.f32.mrf.mxu0
        %v801 = vpop.f32.mrf.mxu0
        %v802 = vadd.f32 0.0, %v801
        %v803 = vpop.f32.mrf.mxu0
        %804 = vmatprep.mubr.bf16.mxu0 0
        %805 = vmatmul.mubr.bf16.gmra.mxu0 %v608
        %v806 = vpop.f32.mrf.mxu0
        %v807 = vadd.f32 0.0, %v806
        %v808 = vpop.f32.mrf.mxu0
        %v809 = vpop.f32.mrf.mxu0
        %v810 = vadd.f32 0.0, %v809
        %v811 = vpop.f32.mrf.mxu0
        %812 = vmatprep.mubr.bf16.mxu0 0
        %813 = vmatmul.mubr.bf16.gmra.mxu0 %v609
        %v814 = vpop.f32.mrf.mxu0
        %v815 = vadd.f32 0.0, %v814
        %v816 = vpop.f32.mrf.mxu0
        %v817 = vpop.f32.mrf.mxu0
        %v818 = vadd.f32 0.0, %v817
        %v819 = vpop.f32.mrf.mxu0
        %820 = vmatprep.mubr.bf16.mxu0 0
        %821 = vmatmul.mubr.bf16.gmra.mxu0 %v610
        %v822 = vpop.f32.mrf.mxu0
        %v823 = vadd.f32 0.0, %v822
        %v824 = vpop.f32.mrf.mxu0
        %v825 = vpop.f32.mrf.mxu0
        %v826 = vadd.f32 0.0, %v825
        %v827 = vpop.f32.mrf.mxu0
        %828 = vmatprep.mubr.bf16.mxu0 0
        %829 = vmatmul.mubr.bf16.gmra.mxu0 %v611
        %v830 = vpop.f32.mrf.mxu0
        %v831 = vadd.f32 0.0, %v830
        %v832 = vpop.f32.mrf.mxu0
        %v833 = vpop.f32.mrf.mxu0
        %v834 = vadd.f32 0.0, %v833
        %v835 = vpop.f32.mrf.mxu0
        %836 = vdwg.mxu0
        %v837 = vmax.f32 %v711, %v714
        %v838 = vrot.slane %v837, 4
        %v839 = vmax.f32 %v837, %v838
        %v840 = vrot.slane %v839, 2
        %v841 = vmax.f32 %v839, %v840
        %v842 = vrot.slane %v841, 1
        %v843 = vmax.f32 %v841, %v842
        %v844 = vmax.f32 %v719, %v722
        %v845 = vrot.slane %v844, 4
        %v846 = vmax.f32 %v844, %v845
        %v847 = vrot.slane %v846, 2
        %v848 = vmax.f32 %v846, %v847
        %v849 = vrot.slane %v848, 1
        %v850 = vmax.f32 %v848, %v849
        %v851 = vmax.f32 %v727, %v730
        %v852 = vrot.slane %v851, 4
        %v853 = vmax.f32 %v851, %v852
        %v854 = vrot.slane %v853, 2
        %v855 = vmax.f32 %v853, %v854
        %v856 = vrot.slane %v855, 1
        %v857 = vmax.f32 %v855, %v856
        %v858 = vmax.f32 %v735, %v738
        %v859 = vrot.slane %v858, 4
        %v860 = vmax.f32 %v858, %v859
        %v861 = vrot.slane %v860, 2
        %v862 = vmax.f32 %v860, %v861
        %v863 = vrot.slane %v862, 1
        %v864 = vmax.f32 %v862, %v863
        %v865 = vmax.f32 %v743, %v746
        %v866 = vrot.slane %v865, 4
        %v867 = vmax.f32 %v865, %v866
        %v868 = vrot.slane %v867, 2
        %v869 = vmax.f32 %v867, %v868
        %v870 = vrot.slane %v869, 1
        %v871 = vmax.f32 %v869, %v870
        %v872 = vmax.f32 %v751, %v754
        %v873 = vrot.slane %v872, 4
        %v874 = vmax.f32 %v872, %v873
        %v875 = vrot.slane %v874, 2
        %v876 = vmax.f32 %v874, %v875
        %v877 = vrot.slane %v876, 1
        %v878 = vmax.f32 %v876, %v877
        %v879 = vmax.f32 %v759, %v762
        %v880 = vrot.slane %v879, 4
        %v881 = vmax.f32 %v879, %v880
        %v882 = vrot.slane %v881, 2
        %v883 = vmax.f32 %v881, %v882
        %v884 = vrot.slane %v883, 1
        %v885 = vmax.f32 %v883, %v884
        %v886 = vmax.f32 %v767, %v770
        %v887 = vrot.slane %v886, 4
        %v888 = vmax.f32 %v886, %v887
        %v889 = vrot.slane %v888, 2
        %v890 = vmax.f32 %v888, %v889
        %v891 = vrot.slane %v890, 1
        %v892 = vmax.f32 %v890, %v891
        %v893 = vmax.f32 %v775, %v778
        %v894 = vrot.slane %v893, 4
        %v895 = vmax.f32 %v893, %v894
        %v896 = vrot.slane %v895, 2
        %v897 = vmax.f32 %v895, %v896
        %v898 = vrot.slane %v897, 1
        %v899 = vmax.f32 %v897, %v898
        %v900 = vmax.f32 %v783, %v786
        %v901 = vrot.slane %v900, 4
        %v902 = vmax.f32 %v900, %v901
        %v903 = vrot.slane %v902, 2
        %v904 = vmax.f32 %v902, %v903
        %v905 = vrot.slane %v904, 1
        %v906 = vmax.f32 %v904, %v905
        %v907 = vmax.f32 %v791, %v794
        %v908 = vrot.slane %v907, 4
        %v909 = vmax.f32 %v907, %v908
        %v910 = vrot.slane %v909, 2
        %v911 = vmax.f32 %v909, %v910
        %v912 = vrot.slane %v911, 1
        %v913 = vmax.f32 %v911, %v912
        %v914 = vmax.f32 %v799, %v802
        %v915 = vrot.slane %v914, 4
        %v916 = vmax.f32 %v914, %v915
        %v917 = vrot.slane %v916, 2
        %v918 = vmax.f32 %v916, %v917
        %v919 = vrot.slane %v918, 1
        %v920 = vmax.f32 %v918, %v919
        %v921 = vmax.f32 %v807, %v810
        %v922 = vrot.slane %v921, 4
        %v923 = vmax.f32 %v921, %v922
        %v924 = vrot.slane %v923, 2
        %v925 = vmax.f32 %v923, %v924
        %v926 = vrot.slane %v925, 1
        %v927 = vmax.f32 %v925, %v926
        %v928 = vmax.f32 %v815, %v818
        %v929 = vrot.slane %v928, 4
        %v930 = vmax.f32 %v928, %v929
        %v931 = vrot.slane %v930, 2
        %v932 = vmax.f32 %v930, %v931
        %v933 = vrot.slane %v932, 1
        %v934 = vmax.f32 %v932, %v933
        %v935 = vmax.f32 %v823, %v826
        %v936 = vrot.slane %v935, 4
        %v937 = vmax.f32 %v935, %v936
        %v938 = vrot.slane %v937, 2
        %v939 = vmax.f32 %v937, %v938
        %v940 = vrot.slane %v939, 1
        %v941 = vmax.f32 %v939, %v940
        %v942 = vmax.f32 %v831, %v834
        %v943 = vrot.slane %v942, 4
        %v944 = vmax.f32 %v942, %v943
        %v945 = vrot.slane %v944, 2
        %v946 = vmax.f32 %v944, %v945
        %v947 = vrot.slane %v946, 1
        %v948 = vmax.f32 %v946, %v947
        %v949 = vld [vmem:[%s4] sm:$0x1]
        %v951 = vlaneseq
        %v952 = vshrl.u32 %v951, 7
        %v953 = vsub.s32 0, %v952
        %v954 = vrot.slane %v949, %v953
        %v956 = vadd.f32 %v843, %v954
        %v957 = vadd.f32 %v850, %v954
        %v958 = vadd.f32 %v857, %v954
        %v959 = vadd.f32 %v864, %v954
        %v960 = vadd.f32 %v871, %v954
        %v961 = vadd.f32 %v878, %v954
        %v962 = vadd.f32 %v885, %v954
        %v963 = vadd.f32 %v892, %v954
        %v964 = vadd.f32 %v899, %v954
        %v965 = vadd.f32 %v906, %v954
        %v966 = vadd.f32 %v913, %v954
        %v967 = vadd.f32 %v920, %v954
        %v968 = vadd.f32 %v927, %v954
        %v969 = vadd.f32 %v934, %v954
        %v970 = vadd.f32 %v941, %v954
        %v971 = vadd.f32 %v948, %v954
        %v972 = vmax.f32 %v956, 0.0
        %v973 = vmax.f32 %v957, 0.0
        %v974 = vmax.f32 %v958, 0.0
        %v975 = vmax.f32 %v959, 0.0
        %v976 = vmax.f32 %v960, 0.0
        %v977 = vmax.f32 %v961, 0.0
        %v978 = vmax.f32 %v962, 0.0
        %v979 = vmax.f32 %v963, 0.0
        %v980 = vmax.f32 %v964, 0.0
        %v981 = vmax.f32 %v965, 0.0
        %v982 = vmax.f32 %v966, 0.0
        %v983 = vmax.f32 %v967, 0.0
        %v984 = vmax.f32 %v968, 0.0
        %v985 = vmax.f32 %v969, 0.0
        %v986 = vmax.f32 %v970, 0.0
        %v987 = vmax.f32 %v971, 0.0
        %v1004 = vrot.slane %v973, 7
        %vm1005 = vcmask 1041409
        %v1006 = vsel %vm1005, %v1004, %v972
        %v1007 = vrot.slane %v974, 6
        %vm1008 = vcmask 1042434
        %v1009 = vsel %vm1008, %v1007, %v1006
        %v1010 = vrot.slane %v975, 5
        %vm1011 = vcmask 1043459
        %v1012 = vsel %vm1011, %v1010, %v1009
        %v1013 = vrot.slane %v976, 4
        %vm1014 = vcmask 1044484
        %v1015 = vsel %vm1014, %v1013, %v1012
        %v1016 = vrot.slane %v977, 3
        %vm1017 = vcmask 1045509
        %v1018 = vsel %vm1017, %v1016, %v1015
        %v1019 = vrot.slane %v978, 2
        %vm1020 = vcmask 1046534
        %v1021 = vsel %vm1020, %v1019, %v1018
        %v1022 = vrot.slane %v979, 1
        %vm1023 = vcmask 1047559
        %v1024 = vsel %vm1023, %v1022, %v1021
        %v1025 = vrot.slane %v981, 7
        %v1026 = vsel %vm1005, %v1025, %v980
        %v1027 = vrot.slane %v982, 6
        %v1028 = vsel %vm1008, %v1027, %v1026
        %v1029 = vrot.slane %v983, 5
        %v1030 = vsel %vm1011, %v1029, %v1028
        %v1031 = vrot.slane %v984, 4
        %v1032 = vsel %vm1014, %v1031, %v1030
        %v1033 = vrot.slane %v985, 3
        %v1034 = vsel %vm1017, %v1033, %v1032
        %v1035 = vrot.slane %v986, 2
        %v1036 = vsel %vm1020, %v1035, %v1034
        %v1037 = vrot.slane %v987, 1
        %v1038 = vsel %vm1023, %v1037, %v1036
        %1041 = vst [vmem:[%s220] sm:$0xff] %v1024
        %1042 = vst [vmem:[%s220 + $0x8] sm:$0xff] %v1038
        %s1043 = sand.u32 %s137, 1
        %s1044 = scalar_lea.sflag [#allocation3], %s1043
        %s1045 = sand.u32 %s137, 1
        %s1046 = smul.addr %s1045, 16
        %s1047 = scalar_lea.vmem [#allocation2], %s1046
        // Predicated region
        $region41: #{tpu_custom_call.1} parent=39 // pred_check
          %p1048 = pneg %p147
        $region42: #{tpu_custom_call.1} parent=39 // pred_check_branch
          %1050 = sbr.rel (%p1048) target = $region44
        $region43: #{tpu_custom_call.1} parent=39 // pred_region
          %s1051 = smul.u32 2, %s19
          %s1053 = ssub.s32 256, 256
          %1054 = vsyncadd %s1044, %s1053
          %s1055 = smul.addr %s1051, 128
          %s1056 = scalar_lea.hbm %s5, %s1055
          %s1057 = sshll.u32 %s1047, 4
          %s1058 = int_to_ptr.vmem [resolvable:$true] %s1057
          %1063 = dma.vmem_to_hbm [thread:$0]  %s1058, 256, %s1056, %s1044, 128, 128, 8
        $region44: #{tpu_custom_call.1} parent=39 // pred_fallthru
          _
      $region40: #{tpu_custom_call.1} parent=5 // pred_fallthru
        _
      %p1064 = scmp.le.s32.totalorder 2, %s14
      // Predicated region
      $region45: #{tpu_custom_call.1} parent=5 // pred_check
        %p1065 = pneg %p1064
      $region46: #{tpu_custom_call.1} parent=5 // pred_check_branch
        %1067 = sbr.rel (%p1065) target = $region48
      $region47: #{tpu_custom_call.1} parent=5 // pred_region
        %s1068 = ssub.s32 %s14, 2
        // Predicated region
        $region49: #{tpu_custom_call.1} parent=47 // pred_check
          %p1069 = pneg %p153
        $region50: #{tpu_custom_call.1} parent=47 // pred_check_branch
          %1071 = sbr.rel (%p1069) target = $region52
        $region51: #{tpu_custom_call.1} parent=47 // pred_region
          %s1072 = sand.u32 %s138, 1
          %s1073 = scalar_lea.sflag [#allocation3], %s1072
          %s1074 = sand.u32 %s138, 1
          %s1075 = smul.addr %s1074, 16
          %s1076 = scalar_lea.vmem [#allocation2], %s1075
          %1077 = dma.done %s1073, 256
        $region52: #{tpu_custom_call.1} parent=47 // pred_fallthru
          _
      $region48: #{tpu_custom_call.1} parent=5 // pred_fallthru
        _
    $region6: #{tpu_custom_call.1} parent=1 // loop_footer
      %s18 = sadd.s32 1, %s14
    $region7: #{tpu_custom_call.1} parent=1 // loop_footer_branch
      %13 = sbr.rel target = $region3
    $region8: #{tpu_custom_call.1} parent=1 // loop_exit
      _
    %1078 = vsyncpa [#allocation3], 1
    %s1079 = scalar_lea.sflag [#allocation3], 1
    %1080 = vsyncpa %s1079, 1

// kernel: tpu_custom_call.1
$region0: #{tpu_custom_call.1}
  #allocation0 [shape = 'u32[]', space=smem, size = 0x4, offset = 0x4, fixed_abs, tag = 'smem constant byte address 0x4 - core index']
  #allocation1 [shape = 'u32[144,128]{1,0:T(1,128)}', space=vmem, size = 0x12000, scoped, tag = 'internal scratch']
  %s0 = inlined_call_operand.vmem [shape: bf16[32,16,8], index: 0, kind: input, shape index: {}]
  %s1 = inlined_call_operand.vmem [shape: bf16[8,128], index: 1, kind: input, shape index: {}]
  %s2 = inlined_call_operand.vmem [shape: f32[1,128], index: 2, kind: input, shape index: {}]
  %s3 = inlined_call_operand.vmem [shape: bf16[128,128], index: 3, kind: input, shape index: {}]
  %s4 = inlined_call_operand.vmem [shape: f32[1,128], index: 4, kind: input, shape index: {}]
  %s5 = inlined_call_operand.hbm [shape: f32[32,128], index: 5, kind: output, shape index: {}]
  %s6 = sld [smem:[#allocation0]]
  $region53: #{tpu_custom_call.1} parent=0
    _
  %s8 = ssub.s32 1, %s6
  %s9 = scalar_select 0, %s8, %s6
  $region1: #{tpu_custom_call.1} parent=0
    #allocation2 [shape = 'u8[16384]{0}', space=vmem, size = 0x4000, scoped, tag = 'output window, operand 0']
    #allocation3 [shape = 's32[2]{0}', space=sflag, size = 0x8, scoped, tag = 'scoped memory for tpu_custom_call.1']
    %10 = vsyncpa [#allocation3], 0
    %s11 = scalar_lea.sflag [#allocation3], 1
    %12 = vsyncpa %s11, 0
    loop: start=0, step=1, limit=4
    $region2: #{tpu_custom_call.1} parent=1 // loop_pre_header
      _
    $region3: #{tpu_custom_call.1} parent=1 // loop_header
      %s14 = sphi 0, %s18
      %p15 = scmp.ge.s32.totalorder %s14, 4
      %s24 = sphi 0, %s26
      %s27 = sphi 0, %s24
      %s28 = sphi 0, %s27
      %s44 = sphi 0, %s28
      %s48 = sphi 0, %s48
      %s50 = sphi 0, %s48
      %s51 = sphi 0, %s50
      %s65 = sphi 0, %s51
      %s69 = sphi 0, %s69
      %s71 = sphi 0, %s69
      %s72 = sphi 0, %s71
      %s86 = sphi 0, %s72
      %s90 = sphi 0, %s90
      %s92 = sphi 0, %s90
      %s93 = sphi 0, %s92
      %s107 = sphi 0, %s93
      %s111 = sphi 0, %s111
      %s113 = sphi 0, %s111
      %s114 = sphi 0, %s113
      %s128 = sphi 0, %s114
      %s134 = sphi 0, %s136
      %s137 = sphi 0, %s134
      %s138 = sphi 0, %s137
      %s154 = sphi 0, %s138
    $region4: #{tpu_custom_call.1} parent=1 // loop_header_branch
      %17 = sbr.rel (%p15) target = $region8
    $region5: #{tpu_custom_call.1} parent=1 // loop_body
      %s19 = ssub.s32 %s14, 1
      %s20 = ssub.s32 %s14, 2
      %s21 = sadd.s32 %s14, 1
      %s22 = ssub.s32 %s14, %s21
      %p23 = scmp.eq.s32.totalorder %s22, 0
      %s25 = sadd.s32 %s24, 1
      %s26 = scalar_select %p23, %s24, %s25
      %p29 = pneg %p23
      %p30 = scmp.eq.s32.totalorder %s14, 1
      %p31 = por %p29, %p30
      %p32 = scmp.ne.s32.totalorder %s24, %s27
      %p33 = scmp.eq.s32.totalorder %s14, 0
      %p34 = por %p32, %p33
      %p35 = scmp.ne.s32.totalorder %s24, %s27
      %p36 = scmp.eq.s32.totalorder %s19, 1
      %p37 = por %p35, %p36
      %p38 = scmp.ne.s32.totalorder %s27, %s28
      %p39 = scmp.eq.s32.totalorder %s19, 0
      %p40 = por %p38, %p39
      %p41 = scmp.ne.s32.totalorder %s27, %s28
      %p42 = scmp.eq.s32.totalorder %s20, 1
      %p43 = por %p41, %p42
      %p45 = scmp.ne.s32.totalorder %s28, %s44
      %p46 = scmp.eq.s32.totalorder %s20, 0
      %p47 = por %p45, %p46
      %s49 = sadd.s32 %s48, 1
      %p52 = scmp.eq.s32.totalorder %s14, 1
      %p53 = scmp.ne.s32.totalorder %s48, %s50
      %p54 = scmp.eq.s32.totalorder %s14, 0
      %p55 = por %p53, %p54
      %p56 = scmp.ne.s32.totalorder %s48, %s50
      %p57 = scmp.eq.s32.totalorder %s19, 1
      %p58 = por %p56, %p57
      %p59 = scmp.ne.s32.totalorder %s50, %s51
      %p60 = scmp.eq.s32.totalorder %s19, 0
      %p61 = por %p59, %p60
      %p62 = scmp.ne.s32.totalorder %s50, %s51
      %p63 = scmp.eq.s32.totalorder %s20, 1
      %p64 = por %p62, %p63
      %p66 = scmp.ne.s32.totalorder %s51, %s65
      %p67 = scmp.eq.s32.totalorder %s20, 0
      %p68 = por %p66, %p67
      %s70 = sadd.s32 %s69, 1
      %p73 = scmp.eq.s32.totalorder %s14, 1
      %p74 = scmp.ne.s32.totalorder %s69, %s71
      %p75 = scmp.eq.s32.totalorder %s14, 0
      %p76 = por %p74, %p75
      %p77 = scmp.ne.s32.totalorder %s69, %s71
      %p78 = scmp.eq.s32.totalorder %s19, 1
      %p79 = por %p77, %p78
      %p80 = scmp.ne.s32.totalorder %s71, %s72
      %p81 = scmp.eq.s32.totalorder %s19, 0
      %p82 = por %p80, %p81
      %p83 = scmp.ne.s32.totalorder %s71, %s72
      %p84 = scmp.eq.s32.totalorder %s20, 1
      %p85 = por %p83, %p84
      %p87 = scmp.ne.s32.totalorder %s72, %s86
      %p88 = scmp.eq.s32.totalorder %s20, 0
      %p89 = por %p87, %p88
      %s91 = sadd.s32 %s90, 1
      %p94 = scmp.eq.s32.totalorder %s14, 1
      %p95 = scmp.ne.s32.totalorder %s90, %s92
      %p96 = scmp.eq.s32.totalorder %s14, 0
      %p97 = por %p95, %p96
      %p98 = scmp.ne.s32.totalorder %s90, %s92
      %p99 = scmp.eq.s32.totalorder %s19, 1
      %p100 = por %p98, %p99
      %p101 = scmp.ne.s32.totalorder %s92, %s93
      %p102 = scmp.eq.s32.totalorder %s19, 0
      %p103 = por %p101, %p102
      %p104 = scmp.ne.s32.totalorder %s92, %s93
      %p105 = scmp.eq.s32.totalorder %s20, 1
      %p106 = por %p104, %p105
      %p108 = scmp.ne.s32.totalorder %s93, %s107
      %p109 = scmp.eq.s32.totalorder %s20, 0
      %p110 = por %p108, %p109
      %s112 = sadd.s32 %s111, 1
      %p115 = scmp.eq.s32.totalorder %s14, 1
      %p116 = scmp.ne.s32.totalorder %s111, %s113
      %p117 = scmp.eq.s32.totalorder %s14, 0
      %p118 = por %p116, %p117
      %p119 = scmp.ne.s32.totalorder %s111, %s113
      %p120 = scmp.eq.s32.totalorder %s19, 1
      %p121 = por %p119, %p120
      %p122 = scmp.ne.s32.totalorder %s113, %s114
      %p123 = scmp.eq.s32.totalorder %s19, 0
      %p124 = por %p122, %p123
      %p125 = scmp.ne.s32.totalorder %s113, %s114
      %p126 = scmp.eq.s32.totalorder %s20, 1
      %p127 = por %p125, %p126
      %p129 = scmp.ne.s32.totalorder %s114, %s128
      %p130 = scmp.eq.s32.totalorder %s20, 0
      %p131 = por %p129, %p130
      %s132 = ssub.s32 %s14, %s21
      %p133 = scmp.eq.s32.totalorder %s132, 0
      %s135 = sadd.s32 %s134, 1
      %s136 = scalar_select %p133, %s134, %s135
      %p139 = pneg %p133
      %p140 = scmp.eq.s32.totalorder %s14, 1
      %p141 = por %p139, %p140
      %p142 = scmp.ne.s32.totalorder %s134, %s137
      %p143 = scmp.eq.s32.totalorder %s14, 0
      %p144 = por %p142, %p143
      %p145 = scmp.ne.s32.totalorder %s134, %s137
      %p146 = scmp.eq.s32.totalorder %s19, 1
      %p147 = por %p145, %p146
      %p148 = scmp.ne.s32.totalorder %s137, %s138
      %p149 = scmp.eq.s32.totalorder %s19, 0
      %p150 = por %p148, %p149
      %p151 = scmp.ne.s32.totalorder %s137, %s138
      %p152 = scmp.eq.s32.totalorder %s20, 1
      %p153 = por %p151, %p152
      %p155 = scmp.ne.s32.totalorder %s138, %s154
      %p156 = scmp.eq.s32.totalorder %s20, 0
      %p157 = por %p155, %p156
      %p158 = scmp.le.s32.totalorder 1, %s14
      %p159 = scmp.lt.s32.totalorder %s14, 3
      %p160 = pnand %p158, %p159
      %p161 = pneg %p160
      // Predicated region
      $region9: #{tpu_custom_call.1} parent=5 // pred_check
        _
      $region10: #{tpu_custom_call.1} parent=5 // pred_check_branch
        %163 = sbr.rel (%p160) target = $region12
      $region11: #{tpu_custom_call.1} parent=5 // pred_region
        %s164 = ssub.s32 %s14, 1
        // Predicated region
        $region13: #{tpu_custom_call.1} parent=11 // pred_check
          %p165 = pneg %p61
        $region14: #{tpu_custom_call.1} parent=11 // pred_check_branch
          %167 = sbr.rel (%p165) target = $region16
        $region15: #{tpu_custom_call.1} parent=11 // pred_region
          _
        $region16: #{tpu_custom_call.1} parent=11 // pred_fallthru
          _
        // Predicated region
        $region17: #{tpu_custom_call.1} parent=11 // pred_check
          %p168 = pneg %p82
        $region18: #{tpu_custom_call.1} parent=11 // pred_check_branch
          %170 = sbr.rel (%p168) target = $region20
        $region19: #{tpu_custom_call.1} parent=11 // pred_region
          _
        $region20: #{tpu_custom_call.1} parent=11 // pred_fallthru
          _
        // Predicated region
        $region21: #{tpu_custom_call.1} parent=11 // pred_check
          %p171 = pneg %p103
        $region22: #{tpu_custom_call.1} parent=11 // pred_check_branch
          %173 = sbr.rel (%p171) target = $region24
        $region23: #{tpu_custom_call.1} parent=11 // pred_region
          _
        $region24: #{tpu_custom_call.1} parent=11 // pred_fallthru
          _
        // Predicated region
        $region25: #{tpu_custom_call.1} parent=11 // pred_check
          %p174 = pneg %p124
        $region26: #{tpu_custom_call.1} parent=11 // pred_check_branch
          %176 = sbr.rel (%p174) target = $region28
        $region27: #{tpu_custom_call.1} parent=11 // pred_region
          _
        $region28: #{tpu_custom_call.1} parent=11 // pred_fallthru
          _
      $region12: #{tpu_custom_call.1} parent=5 // pred_fallthru
        _
      %p177 = scmp.lt.s32.totalorder %s14, 2
      // Predicated region
      $region29: #{tpu_custom_call.1} parent=5 // pred_check
        %p178 = pneg %p177
      $region30: #{tpu_custom_call.1} parent=5 // pred_check_branch
        %180 = sbr.rel (%p178) target = $region32
      $region31: #{tpu_custom_call.1} parent=5 // pred_region
        // Predicated region
        $region33: #{tpu_custom_call.1} parent=31 // pred_check
          %p181 = pneg %p34
        $region34: #{tpu_custom_call.1} parent=31 // pred_check_branch
          %183 = sbr.rel (%p181) target = $region36
        $region35: #{tpu_custom_call.1} parent=31 // pred_region
          %s184 = smul.u32 16, %s14
          %p185 = scmp.lt.s32.totalorder %s184, 31
          %s186 = scalar_select %p185, %s184, 31
          %s187 = smul.addr %s186, 2
          %s188 = smul.addr %s187, 4
          %s189 = scalar_lea.vmem %s0, %s188
          %s190 = smul.u32 16, %s14
        $region36: #{tpu_custom_call.1} parent=31 // pred_fallthru
          _
      $region32: #{tpu_custom_call.1} parent=5 // pred_fallthru
        _
      %p191 = scmp.le.s32.totalorder 1, %s14
      %p192 = scmp.lt.s32.totalorder %s14, 3
      %p193 = pnand %p191, %p192
      %p194 = pneg %p193
      // Predicated region
      $region37: #{tpu_custom_call.1} parent=5 // pred_check
        _
      $region38: #{tpu_custom_call.1} parent=5 // pred_check_branch
        %196 = sbr.rel (%p193) target = $region40
      $region39: #{tpu_custom_call.1} parent=5 // pred_region
        %s197 = ssub.s32 %s14, 1
        %s198 = smul.u32 16, %s19
        %p199 = scmp.lt.s32.totalorder %s198, 31
        %s200 = scalar_select %p199, %s198, 31
        %s201 = smul.addr %s200, 2
        %s202 = smul.addr %s201, 4
        %s203 = scalar_lea.vmem %s0, %s202
        %p204 = pneg %p40
        %p205 = pneg %p37
        %p206 = pneg %p61
        %p207 = pneg %p58
        %p208 = pneg %p82
        %p209 = pneg %p79
        %p210 = pneg %p103
        %p211 = pneg %p100
        %p212 = pneg %p124
        %p213 = pneg %p121
        %p214 = pneg %p150
        %p215 = pneg %p147
        %s216 = sand.u32 %s137, 1
        %s217 = scalar_lea.sflag [#allocation3], %s216
        %s218 = sand.u32 %s137, 1
        %s219 = smul.addr %s218, 16
        %s220 = scalar_lea.vmem [#allocation2], %s219
        %s221 = smul.u32 16, %s19
        %p222 = scmp.lt.s32.totalorder %s221, 31
        %s223 = scalar_select %p222, %s221, 31
        %s224 = smul.addr %s223, 2
        %s225 = smul.addr %s224, 4
        %s226 = scalar_lea.vmem %s0, %s225
        %s227 = smul.u32 16, %s19
        %s228 = smul.u32 2, %s19
        %v230 = vld [vmem:[%s226] sm:$0xf]
        %v231 = vld [vmem:[%s226 + $0x4] sm:$0xf]
        %v232 = vld [vmem:[%s226 + $0x8] sm:$0xf]
        %v233 = vld [vmem:[%s226 + $0xc] sm:$0xf]
        %v234 = vld [vmem:[%s226 + $0x10] sm:$0xf]
        %v235 = vld [vmem:[%s226 + $0x14] sm:$0xf]
        %v236 = vld [vmem:[%s226 + $0x18] sm:$0xf]
        %v237 = vld [vmem:[%s226 + $0x1c] sm:$0xf]
        %v238 = vld [vmem:[%s226 + $0x20] sm:$0xf]
        %v239 = vld [vmem:[%s226 + $0x24] sm:$0xf]
        %v240 = vld [vmem:[%s226 + $0x28] sm:$0xf]
        %v241 = vld [vmem:[%s226 + $0x2c] sm:$0xf]
        %v242 = vld [vmem:[%s226 + $0x30] sm:$0xf]
        %v243 = vld [vmem:[%s226 + $0x34] sm:$0xf]
        %v244 = vld [vmem:[%s226 + $0x38] sm:$0xf]
        %v245 = vld [vmem:[%s226 + $0x3c] sm:$0xf]
        %v246 = vld [vmem:[%s226 + $0x40] sm:$0xf]
        %v247 = vld [vmem:[%s226 + $0x44] sm:$0xf]
        %v248 = vld [vmem:[%s226 + $0x48] sm:$0xf]
        %v249 = vld [vmem:[%s226 + $0x4c] sm:$0xf]
        %v250 = vld [vmem:[%s226 + $0x50] sm:$0xf]
        %v251 = vld [vmem:[%s226 + $0x54] sm:$0xf]
        %v252 = vld [vmem:[%s226 + $0x58] sm:$0xf]
        %v253 = vld [vmem:[%s226 + $0x5c] sm:$0xf]
        %v254 = vld [vmem:[%s226 + $0x60] sm:$0xf]
        %v255 = vld [vmem:[%s226 + $0x64] sm:$0xf]
        %v256 = vld [vmem:[%s226 + $0x68] sm:$0xf]
        %v257 = vld [vmem:[%s226 + $0x6c] sm:$0xf]
        %v258 = vld [vmem:[%s226 + $0x70] sm:$0xf]
        %v259 = vld [vmem:[%s226 + $0x74] sm:$0xf]
        %v260 = vld [vmem:[%s226 + $0x78] sm:$0xf]
        %v261 = vld [vmem:[%s226 + $0x7c] sm:$0xf]
        %v262 = vld [vmem:[%s1] sm:$0xf]
        %v263 = vld [vmem:[%s2] sm:$0x1]
        %v265 = vlaneseq
        %v266 = vshrl.u32 %v265, 7
        %v267 = vsub.s32 0, %v266
        %v268 = vrot.slane %v263, %v267
        %v302 = vunpack.c.l.b16 %v230
        %v303 = vunpack.c.l.b16 %v231
        %v304 = vunpack.c.l.b16 %v232
        %v305 = vunpack.c.l.b16 %v233
        %v306 = vunpack.c.l.b16 %v234
        %v307 = vunpack.c.l.b16 %v235
        %v308 = vunpack.c.l.b16 %v236
        %v309 = vunpack.c.l.b16 %v237
        %v310 = vunpack.c.l.b16 %v238
        %v311 = vunpack.c.l.b16 %v239
        %v312 = vunpack.c.l.b16 %v240
        %v313 = vunpack.c.l.b16 %v241
        %v314 = vunpack.c.l.b16 %v242
        %v315 = vunpack.c.l.b16 %v243
        %v316 = vunpack.c.l.b16 %v244
        %v317 = vunpack.c.l.b16 %v245
        %v318 = vunpack.c.l.b16 %v246
        %v319 = vunpack.c.l.b16 %v247
        %v320 = vunpack.c.l.b16 %v248
        %v321 = vunpack.c.l.b16 %v249
        %v322 = vunpack.c.l.b16 %v250
        %v323 = vunpack.c.l.b16 %v251
        %v324 = vunpack.c.l.b16 %v252
        %v325 = vunpack.c.l.b16 %v253
        %v326 = vunpack.c.l.b16 %v254
        %v327 = vunpack.c.l.b16 %v255
        %v328 = vunpack.c.l.b16 %v256
        %v329 = vunpack.c.l.b16 %v257
        %v330 = vunpack.c.l.b16 %v258
        %v331 = vunpack.c.l.b16 %v259
        %v332 = vunpack.c.l.b16 %v260
        %v333 = vunpack.c.l.b16 %v261
        %v334 = vpack.c.b16 %v303, %v302
        %v335 = vpack.c.b16 %v305, %v304
        %v336 = vpack.c.b16 %v307, %v306
        %v337 = vpack.c.b16 %v309, %v308
        %v338 = vpack.c.b16 %v311, %v310
        %v339 = vpack.c.b16 %v313, %v312
        %v340 = vpack.c.b16 %v315, %v314
        %v341 = vpack.c.b16 %v317, %v316
        %v342 = vpack.c.b16 %v319, %v318
        %v343 = vpack.c.b16 %v321, %v320
        %v344 = vpack.c.b16 %v323, %v322
        %v345 = vpack.c.b16 %v325, %v324
        %v346 = vpack.c.b16 %v327, %v326
        %v347 = vpack.c.b16 %v329, %v328
        %v348 = vpack.c.b16 %v331, %v330
        %v349 = vpack.c.b16 %v333, %v332
        %vm350 = vcmask 64512
        %v352 = vsel %vm350, %v334, 0
        %v355 = vsel %vm350, %v335, 0
        %v358 = vsel %vm350, %v336, 0
        %v361 = vsel %vm350, %v337, 0
        %v364 = vsel %vm350, %v338, 0
        %v367 = vsel %vm350, %v339, 0
        %v370 = vsel %vm350, %v340, 0
        %v373 = vsel %vm350, %v341, 0
        %v376 = vsel %vm350, %v342, 0
        %v379 = vsel %vm350, %v343, 0
        %v382 = vsel %vm350, %v344, 0
        %v385 = vsel %vm350, %v345, 0
        %v388 = vsel %vm350, %v346, 0
        %v391 = vsel %vm350, %v347, 0
        %v394 = vsel %vm350, %v348, 0
        %v397 = vsel %vm350, %v349, 0
        %vm399 = vcmask 1043456
        %v401 = vsel %vm399, %v262, 0
        %403 = vmatprep.subr.bf16.mxu0 0
        %404 = vmatpush1.bf16.msra.mxu0 0
        %405 = vmatprep.subr.bf16.mxu0 0
        %406 = vmatpush1.bf16.msra.mxu0 0
        %407 = vmatprep.subr.bf16.mxu0 0
        %408 = vmatpush1.bf16.msra.mxu0 0
        %409 = vmatprep.subr.bf16.mxu0 0
        %410 = vmatpush1.bf16.msra.mxu0 0
        %411 = vmatprep.subr.bf16.mxu0 0
        %412 = vmatpush1.bf16.msra.mxu0 0
        %413 = vmatprep.subr.bf16.mxu0 0
        %414 = vmatpush1.bf16.msra.mxu0 0
        %415 = vmatprep.subr.bf16.mxu0 0
        %416 = vmatpush1.bf16.msra.mxu0 0
        %417 = vmatprep.subr.bf16.mxu0 0
        %418 = vmatpush1.bf16.msra.mxu0 %v401
        %419 = vmatprep.subr.bf16.mxu0 0
        %420 = vmatpush2.bf16.msra.mxu0 0
        %421 = vmatprep.subr.bf16.mxu0 0
        %422 = vmatpush2.bf16.msra.mxu0 0
        %423 = vmatprep.subr.bf16.mxu0 0
        %424 = vmatpush2.bf16.msra.mxu0 0
        %425 = vmatprep.subr.bf16.mxu0 0
        %426 = vmatpush2.bf16.msra.mxu0 0
        %427 = vmatprep.subr.bf16.mxu0 0
        %428 = vmatpush2.bf16.msra.mxu0 0
        %429 = vmatprep.subr.bf16.mxu0 0
        %430 = vmatpush2.bf16.msra.mxu0 0
        %431 = vmatprep.subr.bf16.mxu0 0
        %432 = vmatpush2.bf16.msra.mxu0 0
        %433 = vmatprep.subr.bf16.mxu0 0
        %434 = vmatpush2.bf16.msra.mxu0 0
        %435 = vmatprep.mubr.bf16.mxu0 0
        %436 = vmatmul.mubr.bf16.gmra.mxu0 %v352
        %v437 = vpop.f32.mrf.mxu0
        %v438 = vadd.f32 %v268, %v437
        %v439 = vpop.f32.mrf.mxu0
        %v440 = vpop.f32.mrf.mxu0
        %v441 = vadd.f32 %v268, %v440
        %v442 = vpop.f32.mrf.mxu0
        %443 = vmatprep.mubr.bf16.mxu0 0
        %444 = vmatmul.mubr.bf16.gmra.mxu0 %v355
        %v445 = vpop.f32.mrf.mxu0
        %v446 = vadd.f32 %v268, %v445
        %v447 = vpop.f32.mrf.mxu0
        %v448 = vpop.f32.mrf.mxu0
        %v449 = vadd.f32 %v268, %v448
        %v450 = vpop.f32.mrf.mxu0
        %451 = vmatprep.mubr.bf16.mxu0 0
        %452 = vmatmul.mubr.bf16.gmra.mxu0 %v358
        %v453 = vpop.f32.mrf.mxu0
        %v454 = vadd.f32 %v268, %v453
        %v455 = vpop.f32.mrf.mxu0
        %v456 = vpop.f32.mrf.mxu0
        %v457 = vadd.f32 %v268, %v456
        %v458 = vpop.f32.mrf.mxu0
        %459 = vmatprep.mubr.bf16.mxu0 0
        %460 = vmatmul.mubr.bf16.gmra.mxu0 %v361
        %v461 = vpop.f32.mrf.mxu0
        %v462 = vadd.f32 %v268, %v461
        %v463 = vpop.f32.mrf.mxu0
        %v464 = vpop.f32.mrf.mxu0
        %v465 = vadd.f32 %v268, %v464
        %v466 = vpop.f32.mrf.mxu0
        %467 = vmatprep.mubr.bf16.mxu0 0
        %468 = vmatmul.mubr.bf16.gmra.mxu0 %v364
        %v469 = vpop.f32.mrf.mxu0
        %v470 = vadd.f32 %v268, %v469
        %v471 = vpop.f32.mrf.mxu0
        %v472 = vpop.f32.mrf.mxu0
        %v473 = vadd.f32 %v268, %v472
        %v474 = vpop.f32.mrf.mxu0
        %475 = vmatprep.mubr.bf16.mxu0 0
        %476 = vmatmul.mubr.bf16.gmra.mxu0 %v367
        %v477 = vpop.f32.mrf.mxu0
        %v478 = vadd.f32 %v268, %v477
        %v479 = vpop.f32.mrf.mxu0
        %v480 = vpop.f32.mrf.mxu0
        %v481 = vadd.f32 %v268, %v480
        %v482 = vpop.f32.mrf.mxu0
        %483 = vmatprep.mubr.bf16.mxu0 0
        %484 = vmatmul.mubr.bf16.gmra.mxu0 %v370
        %v485 = vpop.f32.mrf.mxu0
        %v486 = vadd.f32 %v268, %v485
        %v487 = vpop.f32.mrf.mxu0
        %v488 = vpop.f32.mrf.mxu0
        %v489 = vadd.f32 %v268, %v488
        %v490 = vpop.f32.mrf.mxu0
        %491 = vmatprep.mubr.bf16.mxu0 0
        %492 = vmatmul.mubr.bf16.gmra.mxu0 %v373
        %v493 = vpop.f32.mrf.mxu0
        %v494 = vadd.f32 %v268, %v493
        %v495 = vpop.f32.mrf.mxu0
        %v496 = vpop.f32.mrf.mxu0
        %v497 = vadd.f32 %v268, %v496
        %v498 = vpop.f32.mrf.mxu0
        %499 = vmatprep.mubr.bf16.mxu0 0
        %500 = vmatmul.mubr.bf16.gmra.mxu0 %v376
        %v501 = vpop.f32.mrf.mxu0
        %v502 = vadd.f32 %v268, %v501
        %v503 = vpop.f32.mrf.mxu0
        %v504 = vpop.f32.mrf.mxu0
        %v505 = vadd.f32 %v268, %v504
        %v506 = vpop.f32.mrf.mxu0
        %507 = vmatprep.mubr.bf16.mxu0 0
        %508 = vmatmul.mubr.bf16.gmra.mxu0 %v379
        %v509 = vpop.f32.mrf.mxu0
        %v510 = vadd.f32 %v268, %v509
        %v511 = vpop.f32.mrf.mxu0
        %v512 = vpop.f32.mrf.mxu0
        %v513 = vadd.f32 %v268, %v512
        %v514 = vpop.f32.mrf.mxu0
        %515 = vmatprep.mubr.bf16.mxu0 0
        %516 = vmatmul.mubr.bf16.gmra.mxu0 %v382
        %v517 = vpop.f32.mrf.mxu0
        %v518 = vadd.f32 %v268, %v517
        %v519 = vpop.f32.mrf.mxu0
        %v520 = vpop.f32.mrf.mxu0
        %v521 = vadd.f32 %v268, %v520
        %v522 = vpop.f32.mrf.mxu0
        %523 = vmatprep.mubr.bf16.mxu0 0
        %524 = vmatmul.mubr.bf16.gmra.mxu0 %v385
        %v525 = vpop.f32.mrf.mxu0
        %v526 = vadd.f32 %v268, %v525
        %v527 = vpop.f32.mrf.mxu0
        %v528 = vpop.f32.mrf.mxu0
        %v529 = vadd.f32 %v268, %v528
        %v530 = vpop.f32.mrf.mxu0
        %531 = vmatprep.mubr.bf16.mxu0 0
        %532 = vmatmul.mubr.bf16.gmra.mxu0 %v388
        %v533 = vpop.f32.mrf.mxu0
        %v534 = vadd.f32 %v268, %v533
        %v535 = vpop.f32.mrf.mxu0
        %v536 = vpop.f32.mrf.mxu0
        %v537 = vadd.f32 %v268, %v536
        %v538 = vpop.f32.mrf.mxu0
        %539 = vmatprep.mubr.bf16.mxu0 0
        %540 = vmatmul.mubr.bf16.gmra.mxu0 %v391
        %v541 = vpop.f32.mrf.mxu0
        %v542 = vadd.f32 %v268, %v541
        %v543 = vpop.f32.mrf.mxu0
        %v544 = vpop.f32.mrf.mxu0
        %v545 = vadd.f32 %v268, %v544
        %v546 = vpop.f32.mrf.mxu0
        %547 = vmatprep.mubr.bf16.mxu0 0
        %548 = vmatmul.mubr.bf16.gmra.mxu0 %v394
        %v549 = vpop.f32.mrf.mxu0
        %v550 = vadd.f32 %v268, %v549
        %v551 = vpop.f32.mrf.mxu0
        %v552 = vpop.f32.mrf.mxu0
        %v553 = vadd.f32 %v268, %v552
        %v554 = vpop.f32.mrf.mxu0
        %555 = vmatprep.mubr.bf16.mxu0 0
        %556 = vmatmul.mubr.bf16.gmra.mxu0 %v397
        %v557 = vpop.f32.mrf.mxu0
        %v558 = vadd.f32 %v268, %v557
        %v559 = vpop.f32.mrf.mxu0
        %v560 = vpop.f32.mrf.mxu0
        %v561 = vadd.f32 %v268, %v560
        %v562 = vpop.f32.mrf.mxu0
        %563 = vdwg.mxu0
        %v564 = vmax.f32 %v438, 0.0
        %v565 = vmax.f32 %v441, 0.0
        %v566 = vmax.f32 %v446, 0.0
        %v567 = vmax.f32 %v449, 0.0
        %v568 = vmax.f32 %v454, 0.0
        %v569 = vmax.f32 %v457, 0.0
        %v570 = vmax.f32 %v462, 0.0
        %v571 = vmax.f32 %v465, 0.0
        %v572 = vmax.f32 %v470, 0.0
        %v573 = vmax.f32 %v473, 0.0
        %v574 = vmax.f32 %v478, 0.0
        %v575 = vmax.f32 %v481, 0.0
        %v576 = vmax.f32 %v486, 0.0
        %v577 = vmax.f32 %v489, 0.0
        %v578 = vmax.f32 %v494, 0.0
        %v579 = vmax.f32 %v497, 0.0
        %v580 = vmax.f32 %v502, 0.0
        %v581 = vmax.f32 %v505, 0.0
        %v582 = vmax.f32 %v510, 0.0
        %v583 = vmax.f32 %v513, 0.0
        %v584 = vmax.f32 %v518, 0.0
        %v585 = vmax.f32 %v521, 0.0
        %v586 = vmax.f32 %v526, 0.0
        %v587 = vmax.f32 %v529, 0.0
        %v588 = vmax.f32 %v534, 0.0
        %v589 = vmax.f32 %v537, 0.0
        %v590 = vmax.f32 %v542, 0.0
        %v591 = vmax.f32 %v545, 0.0
        %v592 = vmax.f32 %v550, 0.0
        %v593 = vmax.f32 %v553, 0.0
        %v594 = vmax.f32 %v558, 0.0
        %v595 = vmax.f32 %v561, 0.0
        %v596 = vpack.c.bf16 %v565, %v564
        %v597 = vpack.c.bf16 %v567, %v566
        %v598 = vpack.c.bf16 %v569, %v568
        %v599 = vpack.c.bf16 %v571, %v570
        %v600 = vpack.c.bf16 %v573, %v572
        %v601 = vpack.c.bf16 %v575, %v574
        %v602 = vpack.c.bf16 %v577, %v576
        %v603 = vpack.c.bf16 %v579, %v578
        %v604 = vpack.c.bf16 %v581, %v580
        %v605 = vpack.c.bf16 %v583, %v582
        %v606 = vpack.c.bf16 %v585, %v584
        %v607 = vpack.c.bf16 %v587, %v586
        %v608 = vpack.c.bf16 %v589, %v588
        %v609 = vpack.c.bf16 %v591, %v590
        %v610 = vpack.c.bf16 %v593, %v592
        %v611 = vpack.c.bf16 %v595, %v594
        %v612 = vld [vmem:[%s3] sm:$0xf]
        %v613 = vld [vmem:[%s3 + $0x4] sm:$0xf]
        %v614 = vld [vmem:[%s3 + $0x8] sm:$0xf]
        %v615 = vld [vmem:[%s3 + $0xc] sm:$0xf]
        %v616 = vld [vmem:[%s3 + $0x10] sm:$0xf]
        %v617 = vld [vmem:[%s3 + $0x14] sm:$0xf]
        %v618 = vld [vmem:[%s3 + $0x18] sm:$0xf]
        %v619 = vld [vmem:[%s3 + $0x1c] sm:$0xf]
        %v620 = vld [vmem:[%s3 + $0x20] sm:$0xf]
        %v621 = vld [vmem:[%s3 + $0x24] sm:$0xf]
        %v622 = vld [vmem:[%s3 + $0x28] sm:$0xf]
        %v623 = vld [vmem:[%s3 + $0x2c] sm:$0xf]
        %v624 = vld [vmem:[%s3 + $0x30] sm:$0xf]
        %v625 = vld [vmem:[%s3 + $0x34] sm:$0xf]
        %v626 = vld [vmem:[%s3 + $0x38] sm:$0xf]
        %v627 = vld [vmem:[%s3 + $0x3c] sm:$0xf]
        %v644 = vunpack.c.l.b16 %v612
        %v645 = vunpack.c.l.b16 %v613
        %v646 = vunpack.c.l.b16 %v614
        %v647 = vunpack.c.l.b16 %v615
        %v648 = vunpack.c.l.b16 %v616
        %v649 = vunpack.c.l.b16 %v617
        %v650 = vunpack.c.l.b16 %v618
        %v651 = vunpack.c.l.b16 %v619
        %v652 = vunpack.c.l.b16 %v620
        %v653 = vunpack.c.l.b16 %v621
        %v654 = vunpack.c.l.b16 %v622
        %v655 = vunpack.c.l.b16 %v623
        %v656 = vunpack.c.l.b16 %v624
        %v657 = vunpack.c.l.b16 %v625
        %v658 = vunpack.c.l.b16 %v626
        %v659 = vunpack.c.l.b16 %v627
        %v660 = vpack.c.b16 %v645, %v644
        %v661 = vpack.c.b16 %v647, %v646
        %v662 = vpack.c.b16 %v649, %v648
        %v663 = vpack.c.b16 %v651, %v650
        %v664 = vpack.c.b16 %v653, %v652
        %v665 = vpack.c.b16 %v655, %v654
        %v666 = vpack.c.b16 %v657, %v656
        %v667 = vpack.c.b16 %v659, %v658
        %676 = vmatprep.subr.bf16.mxu0 0
        %677 = vmatpush1.bf16.msra.mxu0 %v667
        %678 = vmatprep.subr.bf16.mxu0 0
        %679 = vmatpush1.bf16.msra.mxu0 %v666
        %680 = vmatprep.subr.bf16.mxu0 0
        %681 = vmatpush1.bf16.msra.mxu0 %v665
        %682 = vmatprep.subr.bf16.mxu0 0
        %683 = vmatpush1.bf16.msra.mxu0 %v664
        %684 = vmatprep.subr.bf16.mxu0 0
        %685 = vmatpush1.bf16.msra.mxu0 %v663
        %686 = vmatprep.subr.bf16.mxu0 0
        %687 = vmatpush1.bf16.msra.mxu0 %v662
        %688 = vmatprep.subr.bf16.mxu0 0
        %689 = vmatpush1.bf16.msra.mxu0 %v661
        %690 = vmatprep.subr.bf16.mxu0 0
        %691 = vmatpush1.bf16.msra.mxu0 %v660
        %692 = vmatprep.subr.bf16.mxu0 0
        %693 = vmatpush2.bf16.msra.mxu0 0
        %694 = vmatprep.subr.bf16.mxu0 0
        %695 = vmatpush2.bf16.msra.mxu0 0
        %696 = vmatprep.subr.bf16.mxu0 0
        %697 = vmatpush2.bf16.msra.mxu0 0
        %698 = vmatprep.subr.bf16.mxu0 0
        %699 = vmatpush2.bf16.msra.mxu0 0
        %700 = vmatprep.subr.bf16.mxu0 0
        %701 = vmatpush2.bf16.msra.mxu0 0
        %702 = vmatprep.subr.bf16.mxu0 0
        %703 = vmatpush2.bf16.msra.mxu0 0
        %704 = vmatprep.subr.bf16.mxu0 0
        %705 = vmatpush2.bf16.msra.mxu0 0
        %706 = vmatprep.subr.bf16.mxu0 0
        %707 = vmatpush2.bf16.msra.mxu0 0
        %708 = vmatprep.mubr.bf16.mxu0 0
        %709 = vmatmul.mubr.bf16.gmra.mxu0 %v596
        %v710 = vpop.f32.mrf.mxu0
        %v711 = vadd.f32 0.0, %v710
        %v712 = vpop.f32.mrf.mxu0
        %v713 = vpop.f32.mrf.mxu0
        %v714 = vadd.f32 0.0, %v713
        %v715 = vpop.f32.mrf.mxu0
        %716 = vmatprep.mubr.bf16.mxu0 0
        %717 = vmatmul.mubr.bf16.gmra.mxu0 %v597
        %v718 = vpop.f32.mrf.mxu0
        %v719 = vadd.f32 0.0, %v718
        %v720 = vpop.f32.mrf.mxu0
        %v721 = vpop.f32.mrf.mxu0
        %v722 = vadd.f32 0.0, %v721
        %v723 = vpop.f32.mrf.mxu0
        %724 = vmatprep.mubr.bf16.mxu0 0
        %725 = vmatmul.mubr.bf16.gmra.mxu0 %v598
        %v726 = vpop.f32.mrf.mxu0
        %v727 = vadd.f32 0.0, %v726
        %v728 = vpop.f32.mrf.mxu0
        %v729 = vpop.f32.mrf.mxu0
        %v730 = vadd.f32 0.0, %v729
        %v731 = vpop.f32.mrf.mxu0
        %732 = vmatprep.mubr.bf16.mxu0 0
        %733 = vmatmul.mubr.bf16.gmra.mxu0 %v599
        %v734 = vpop.f32.mrf.mxu0
        %v735 = vadd.f32 0.0, %v734
        %v736 = vpop.f32.mrf.mxu0
        %v737 = vpop.f32.mrf.mxu0
        %v738 = vadd.f32 0.0, %v737
        %v739 = vpop.f32.mrf.mxu0
        %740 = vmatprep.mubr.bf16.mxu0 0
        %741 = vmatmul.mubr.bf16.gmra.mxu0 %v600
        %v742 = vpop.f32.mrf.mxu0
        %v743 = vadd.f32 0.0, %v742
        %v744 = vpop.f32.mrf.mxu0
        %v745 = vpop.f32.mrf.mxu0
        %v746 = vadd.f32 0.0, %v745
        %v747 = vpop.f32.mrf.mxu0
        %748 = vmatprep.mubr.bf16.mxu0 0
        %749 = vmatmul.mubr.bf16.gmra.mxu0 %v601
        %v750 = vpop.f32.mrf.mxu0
        %v751 = vadd.f32 0.0, %v750
        %v752 = vpop.f32.mrf.mxu0
        %v753 = vpop.f32.mrf.mxu0
        %v754 = vadd.f32 0.0, %v753
        %v755 = vpop.f32.mrf.mxu0
        %756 = vmatprep.mubr.bf16.mxu0 0
        %757 = vmatmul.mubr.bf16.gmra.mxu0 %v602
        %v758 = vpop.f32.mrf.mxu0
        %v759 = vadd.f32 0.0, %v758
        %v760 = vpop.f32.mrf.mxu0
        %v761 = vpop.f32.mrf.mxu0
        %v762 = vadd.f32 0.0, %v761
        %v763 = vpop.f32.mrf.mxu0
        %764 = vmatprep.mubr.bf16.mxu0 0
        %765 = vmatmul.mubr.bf16.gmra.mxu0 %v603
        %v766 = vpop.f32.mrf.mxu0
        %v767 = vadd.f32 0.0, %v766
        %v768 = vpop.f32.mrf.mxu0
        %v769 = vpop.f32.mrf.mxu0
        %v770 = vadd.f32 0.0, %v769
        %v771 = vpop.f32.mrf.mxu0
        %772 = vmatprep.mubr.bf16.mxu0 0
        %773 = vmatmul.mubr.bf16.gmra.mxu0 %v604
        %v774 = vpop.f32.mrf.mxu0
        %v775 = vadd.f32 0.0, %v774
        %v776 = vpop.f32.mrf.mxu0
        %v777 = vpop.f32.mrf.mxu0
        %v778 = vadd.f32 0.0, %v777
        %v779 = vpop.f32.mrf.mxu0
        %780 = vmatprep.mubr.bf16.mxu0 0
        %781 = vmatmul.mubr.bf16.gmra.mxu0 %v605
        %v782 = vpop.f32.mrf.mxu0
        %v783 = vadd.f32 0.0, %v782
        %v784 = vpop.f32.mrf.mxu0
        %v785 = vpop.f32.mrf.mxu0
        %v786 = vadd.f32 0.0, %v785
        %v787 = vpop.f32.mrf.mxu0
        %788 = vmatprep.mubr.bf16.mxu0 0
        %789 = vmatmul.mubr.bf16.gmra.mxu0 %v606
        %v790 = vpop.f32.mrf.mxu0
        %v791 = vadd.f32 0.0, %v790
        %v792 = vpop.f32.mrf.mxu0
        %v793 = vpop.f32.mrf.mxu0
        %v794 = vadd.f32 0.0, %v793
        %v795 = vpop.f32.mrf.mxu0
        %796 = vmatprep.mubr.bf16.mxu0 0
        %797 = vmatmul.mubr.bf16.gmra.mxu0 %v607
        %v798 = vpop.f32.mrf.mxu0
        %v799 = vadd.f32 0.0, %v798
        %v800 = vpop.f32.mrf.mxu0
        %v801 = vpop.f32.mrf.mxu0
        %v802 = vadd.f32 0.0, %v801
        %v803 = vpop.f32.mrf.mxu0
        %804 = vmatprep.mubr.bf16.mxu0 0
        %805 = vmatmul.mubr.bf16.gmra.mxu0 %v608
        %v806 = vpop.f32.mrf.mxu0
        %v807 = vadd.f32 0.0, %v806
        %v808 = vpop.f32.mrf.mxu0
        %v809 = vpop.f32.mrf.mxu0
        %v810 = vadd.f32 0.0, %v809
        %v811 = vpop.f32.mrf.mxu0
        %812 = vmatprep.mubr.bf16.mxu0 0
        %813 = vmatmul.mubr.bf16.gmra.mxu0 %v609
        %v814 = vpop.f32.mrf.mxu0
        %v815 = vadd.f32 0.0, %v814
        %v816 = vpop.f32.mrf.mxu0
        %v817 = vpop.f32.mrf.mxu0
        %v818 = vadd.f32 0.0, %v817
        %v819 = vpop.f32.mrf.mxu0
        %820 = vmatprep.mubr.bf16.mxu0 0
        %821 = vmatmul.mubr.bf16.gmra.mxu0 %v610
        %v822 = vpop.f32.mrf.mxu0
        %v823 = vadd.f32 0.0, %v822
        %v824 = vpop.f32.mrf.mxu0
        %v825 = vpop.f32.mrf.mxu0
        %v826 = vadd.f32 0.0, %v825
        %v827 = vpop.f32.mrf.mxu0
        %828 = vmatprep.mubr.bf16.mxu0 0
        %829 = vmatmul.mubr.bf16.gmra.mxu0 %v611
        %v830 = vpop.f32.mrf.mxu0
        %v831 = vadd.f32 0.0, %v830
        %v832 = vpop.f32.mrf.mxu0
        %v833 = vpop.f32.mrf.mxu0
        %v834 = vadd.f32 0.0, %v833
        %v835 = vpop.f32.mrf.mxu0
        %836 = vdwg.mxu0
        %v837 = vmax.f32 %v711, %v714
        %v838 = vrot.slane %v837, 4
        %v839 = vmax.f32 %v837, %v838
        %v840 = vrot.slane %v839, 2
        %v841 = vmax.f32 %v839, %v840
        %v842 = vrot.slane %v841, 1
        %v843 = vmax.f32 %v841, %v842
        %v844 = vmax.f32 %v719, %v722
        %v845 = vrot.slane %v844, 4
        %v846 = vmax.f32 %v844, %v845
        %v847 = vrot.slane %v846, 2
        %v848 = vmax.f32 %v846, %v847
        %v849 = vrot.slane %v848, 1
        %v850 = vmax.f32 %v848, %v849
        %v851 = vmax.f32 %v727, %v730
        %v852 = vrot.slane %v851, 4
        %v853 = vmax.f32 %v851, %v852
        %v854 = vrot.slane %v853, 2
        %v855 = vmax.f32 %v853, %v854
        %v856 = vrot.slane %v855, 1
        %v857 = vmax.f32 %v855, %v856
        %v858 = vmax.f32 %v735, %v738
        %v859 = vrot.slane %v858, 4
        %v860 = vmax.f32 %v858, %v859
        %v861 = vrot.slane %v860, 2
        %v862 = vmax.f32 %v860, %v861
        %v863 = vrot.slane %v862, 1
        %v864 = vmax.f32 %v862, %v863
        %v865 = vmax.f32 %v743, %v746
        %v866 = vrot.slane %v865, 4
        %v867 = vmax.f32 %v865, %v866
        %v868 = vrot.slane %v867, 2
        %v869 = vmax.f32 %v867, %v868
        %v870 = vrot.slane %v869, 1
        %v871 = vmax.f32 %v869, %v870
        %v872 = vmax.f32 %v751, %v754
        %v873 = vrot.slane %v872, 4
        %v874 = vmax.f32 %v872, %v873
        %v875 = vrot.slane %v874, 2
        %v876 = vmax.f32 %v874, %v875
        %v877 = vrot.slane %v876, 1
        %v878 = vmax.f32 %v876, %v877
        %v879 = vmax.f32 %v759, %v762
        %v880 = vrot.slane %v879, 4
        %v881 = vmax.f32 %v879, %v880
        %v882 = vrot.slane %v881, 2
        %v883 = vmax.f32 %v881, %v882
        %v884 = vrot.slane %v883, 1
        %v885 = vmax.f32 %v883, %v884
        %v886 = vmax.f32 %v767, %v770
        %v887 = vrot.slane %v886, 4
        %v888 = vmax.f32 %v886, %v887
        %v889 = vrot.slane %v888, 2
        %v890 = vmax.f32 %v888, %v889
        %v891 = vrot.slane %v890, 1
        %v892 = vmax.f32 %v890, %v891
        %v893 = vmax.f32 %v775, %v778
        %v894 = vrot.slane %v893, 4
        %v895 = vmax.f32 %v893, %v894
        %v896 = vrot.slane %v895, 2
        %v897 = vmax.f32 %v895, %v896
        %v898 = vrot.slane %v897, 1
        %v899 = vmax.f32 %v897, %v898
        %v900 = vmax.f32 %v783, %v786
        %v901 = vrot.slane %v900, 4
        %v902 = vmax.f32 %v900, %v901
        %v903 = vrot.slane %v902, 2
        %v904 = vmax.f32 %v902, %v903
        %v905 = vrot.slane %v904, 1
        %v906 = vmax.f32 %v904, %v905
        %v907 = vmax.f32 %v791, %v794
        %v908 = vrot.slane %v907, 4
        %v909 = vmax.f32 %v907, %v908
        %v910 = vrot.slane %v909, 2
        %v911 = vmax.f32 %v909, %v910
        %v912 = vrot.slane %v911, 1
        %v913 = vmax.f32 %v911, %v912
        %v914 = vmax.f32 %v799, %v802
        %v915 = vrot.slane %v914, 4
        %v916 = vmax.f32 %v914, %v915
        %v917 = vrot.slane %v916, 2
        %v918 = vmax.f32 %v916, %v917
        %v919 = vrot.slane %v918, 1
        %v920 = vmax.f32 %v918, %v919
        %v921 = vmax.f32 %v807, %v810
        %v922 = vrot.slane %v921, 4
        %v923 = vmax.f32 %v921, %v922
        %v924 = vrot.slane %v923, 2
        %v925 = vmax.f32 %v923, %v924
        %v926 = vrot.slane %v925, 1
        %v927 = vmax.f32 %v925, %v926
        %v928 = vmax.f32 %v815, %v818
        %v929 = vrot.slane %v928, 4
        %v930 = vmax.f32 %v928, %v929
        %v931 = vrot.slane %v930, 2
        %v932 = vmax.f32 %v930, %v931
        %v933 = vrot.slane %v932, 1
        %v934 = vmax.f32 %v932, %v933
        %v935 = vmax.f32 %v823, %v826
        %v936 = vrot.slane %v935, 4
        %v937 = vmax.f32 %v935, %v936
        %v938 = vrot.slane %v937, 2
        %v939 = vmax.f32 %v937, %v938
        %v940 = vrot.slane %v939, 1
        %v941 = vmax.f32 %v939, %v940
        %v942 = vmax.f32 %v831, %v834
        %v943 = vrot.slane %v942, 4
        %v944 = vmax.f32 %v942, %v943
        %v945 = vrot.slane %v944, 2
        %v946 = vmax.f32 %v944, %v945
        %v947 = vrot.slane %v946, 1
        %v948 = vmax.f32 %v946, %v947
        %v949 = vld [vmem:[%s4] sm:$0x1]
        %v951 = vlaneseq
        %v952 = vshrl.u32 %v951, 7
        %v953 = vsub.s32 0, %v952
        %v954 = vrot.slane %v949, %v953
        %v956 = vadd.f32 %v843, %v954
        %v957 = vadd.f32 %v850, %v954
        %v958 = vadd.f32 %v857, %v954
        %v959 = vadd.f32 %v864, %v954
        %v960 = vadd.f32 %v871, %v954
        %v961 = vadd.f32 %v878, %v954
        %v962 = vadd.f32 %v885, %v954
        %v963 = vadd.f32 %v892, %v954
        %v964 = vadd.f32 %v899, %v954
        %v965 = vadd.f32 %v906, %v954
        %v966 = vadd.f32 %v913, %v954
        %v967 = vadd.f32 %v920, %v954
        %v968 = vadd.f32 %v927, %v954
        %v969 = vadd.f32 %v934, %v954
        %v970 = vadd.f32 %v941, %v954
        %v971 = vadd.f32 %v948, %v954
        %v972 = vmax.f32 %v956, 0.0
        %v973 = vmax.f32 %v957, 0.0
        %v974 = vmax.f32 %v958, 0.0
        %v975 = vmax.f32 %v959, 0.0
        %v976 = vmax.f32 %v960, 0.0
        %v977 = vmax.f32 %v961, 0.0
        %v978 = vmax.f32 %v962, 0.0
        %v979 = vmax.f32 %v963, 0.0
        %v980 = vmax.f32 %v964, 0.0
        %v981 = vmax.f32 %v965, 0.0
        %v982 = vmax.f32 %v966, 0.0
        %v983 = vmax.f32 %v967, 0.0
        %v984 = vmax.f32 %v968, 0.0
        %v985 = vmax.f32 %v969, 0.0
        %v986 = vmax.f32 %v970, 0.0
        %v987 = vmax.f32 %v971, 0.0
        %v1004 = vrot.slane %v973, 7
        %vm1005 = vcmask 1041409
        %v1006 = vsel %vm1005, %v1004, %v972
        %v1007 = vrot.slane %v974, 6
        %vm1008 = vcmask 1042434
        %v1009 = vsel %vm1008, %v1007, %v1006
        %v1010 = vrot.slane %v975, 5
        %vm1011 = vcmask 1043459
        %v1012 = vsel %vm1011, %v1010, %v1009
        %v1013 = vrot.slane %v976, 4
        %vm1014 = vcmask 1044484
        %v1015 = vsel %vm1014, %v1013, %v1012
        %v1016 = vrot.slane %v977, 3
        %vm1017 = vcmask 1045509
        %v1018 = vsel %vm1017, %v1016, %v1015
        %v1019 = vrot.slane %v978, 2
        %vm1020 = vcmask 1046534
        %v1021 = vsel %vm1020, %v1019, %v1018
        %v1022 = vrot.slane %v979, 1
        %vm1023 = vcmask 1047559
        %v1024 = vsel %vm1023, %v1022, %v1021
        %v1025 = vrot.slane %v981, 7
        %v1026 = vsel %vm1005, %v1025, %v980
        %v1027 = vrot.slane %v982, 6
        %v1028 = vsel %vm1008, %v1027, %v1026
        %v1029 = vrot.slane %v983, 5
        %v1030 = vsel %vm1011, %v1029, %v1028
        %v1031 = vrot.slane %v984, 4
        %v1032 = vsel %vm1014, %v1031, %v1030
        %v1033 = vrot.slane %v985, 3
        %v1034 = vsel %vm1017, %v1033, %v1032
        %v1035 = vrot.slane %v986, 2
        %v1036 = vsel %vm1020, %v1035, %v1034
        %v1037 = vrot.slane %v987, 1
        %v1038 = vsel %vm1023, %v1037, %v1036
        %1041 = vst [vmem:[%s220] sm:$0xff] %v1024
        %1042 = vst [vmem:[%s220 + $0x8] sm:$0xff] %v1038
        %s1043 = sand.u32 %s137, 1
        %s1044 = scalar_lea.sflag [#allocation3], %s1043
        %s1045 = sand.u32 %s137, 1
        %s1046 = smul.addr %s1045, 16
        %s1047 = scalar_lea.vmem [#allocation2], %s1046
        // Predicated region
        $region41: #{tpu_custom_call.1} parent=39 // pred_check
          %p1048 = pneg %p147
        $region42: #{tpu_custom_call.1} parent=39 // pred_check_branch
          %1050 = sbr.rel (%p1048) target = $region44
        $region43: #{tpu_custom_call.1} parent=39 // pred_region
          %s1051 = smul.u32 2, %s19
          %s1053 = ssub.s32 256, 256
          %1054 = vsyncadd %s1044, %s1053
          %s1055 = smul.addr %s1051, 128
          %s1056 = scalar_lea.hbm %s5, %s1055
          %s1057 = sshll.u32 %s1047, 4
          %s1058 = int_to_ptr.vmem [resolvable:$true] %s1057
          %1063 = dma.vmem_to_hbm [thread:$0]  %s1058, 256, %s1056, %s1044, 128, 128, 8
        $region44: #{tpu_custom_call.1} parent=39 // pred_fallthru
          _
      $region40: #{tpu_custom_call.1} parent=5 // pred_fallthru
        _
      %p1064 = scmp.le.s32.totalorder 2, %s14
      // Predicated region
      $region45: #{tpu_custom_call.1} parent=5 // pred_check
        %p1065 = pneg %p1064
      $region46: #{tpu_custom_call.1} parent=5 // pred_check_branch
        %1067 = sbr.rel (%p1065) target = $region48
      $region47: #{tpu_custom_call.1} parent=5 // pred_region
        %s1068 = ssub.s32 %s14, 2
        // Predicated region
        $region49: #{tpu_custom_call.1} parent=47 // pred_check
          %p1069 = pneg %p153
        $region50: #{tpu_custom_call.1} parent=47 // pred_check_branch
          %1071 = sbr.rel (%p1069) target = $region52
        $region51: #{tpu_custom_call.1} parent=47 // pred_region
          %s1072 = sand.u32 %s138, 1
          %s1073 = scalar_lea.sflag [#allocation3], %s1072
          %s1074 = sand.u32 %s138, 1
          %s1075 = smul.addr %s1074, 16
          %s1076 = scalar_lea.vmem [#allocation2], %s1075
          %1077 = dma.done %s1073, 256
        $region52: #{tpu_custom_call.1} parent=47 // pred_fallthru
          _
      $region48: #{tpu_custom_call.1} parent=5 // pred_fallthru
        _
    $region6: #{tpu_custom_call.1} parent=1 // loop_footer
      %s18 = sadd.s32 1, %s14
    $region7: #{tpu_custom_call.1} parent=1 // loop_footer_branch
      %13 = sbr.rel target = $region3
    $region8: #{tpu_custom_call.1} parent=1 // loop_exit
      _
    %1078 = vsyncpa [#allocation3], 1
    %s1079 = scalar_lea.sflag [#allocation3], 1
    %1080 = vsyncpa %s1079, 1

</llo_original>
